<compile_context>
chip_gen: v5e
topology: v5e:2x2
jax: 0.10.0
libtpu: 0.0.40
codegen_flags: <defaults>
</compile_context>

<pallas_src>
import jax
import jax.numpy as jnp
from jax import lax
from jax.experimental import pallas as pl
from jax.experimental.pallas import tpu as pltpu
import numpy as np

INPUT_SIZE = 18
HIDDEN_SIZE = 64
NUM_LAYERS = 2
OUTPUT_SIZE = 5

X_LANES = 32          # lane width of the shipped input (>= INPUT_SIZE, rows [18:32] zero)
GATE_BLOCK = 128      # each gate occupies a full 128-lane block
PAD_LANES = 128       # padded output width (lane-dense store)

# Kernel gate-column order [i, f, o, g]; PyTorch row order is [i, f, g, o].
GATE_ORDER = (0, 1, 3, 2)


def _make_kernel(T, TT, Bp):
    HP = GATE_BLOCK
    pad_tail = (T % TT) != 0
    unroll = True if TT <= 16 else 8

    def kernel(x_ref, w0x_ref, w0h_ref, b0_ref, w1_ref, b1_ref, wfc_ref, bfc_ref,
               out_ref, xg_ref, h0_ref, c0_ref, h1_ref, c1_ref):
        tile = pl.program_id(0)

        @pl.when(tile == 0)
        def _():
            z = jnp.zeros((Bp, HP), jnp.float32)
            h0_ref[...] = z
            c0_ref[...] = z
            h1_ref[...] = z
            c1_ref[...] = z

        # Hoisted layer-0 input projection for the whole time tile: one big MXU matmul
        # (M = TT*Bp rows), completely off the serial recurrence.  Pad gate lanes stay 0.
        xg_ref[...] = (jnp.dot(x_ref[...], w0x_ref[...],
                               preferred_element_type=jnp.float32) + b0_ref[...])

        w0h = w0h_ref[...]
        w1 = w1_ref[...]
        b1 = b1_ref[...]

        def cell(g, c):
            # gates ordered [i, f, o, g]: one fused sigmoid over the first 3 blocks.
            sg = 0.5 * jnp.tanh(0.5 * g[:, :3 * HP]) + 0.5
            i = sg[:, 0 * HP:1 * HP]
            f = sg[:, 1 * HP:2 * HP]
            o = sg[:, 2 * HP:3 * HP]
            gg = jnp.tanh(g[:, 3 * HP:4 * HP])
            c_new = f * c + i * gg
            h_new = o * jnp.tanh(c_new)
            return h_new, c_new

        def step(t, carry):
            h0, c0, h1, c1 = carry
            row = pl.multiple_of(t * Bp, Bp)
            # Layer 0: precomputed x-gates + recurrent dot (h0 lives in lanes [64:128]).
            g0 = xg_ref[pl.ds(row, Bp), :] + jnp.dot(
                h0.astype(jnp.bfloat16), w0h, preferred_element_type=jnp.float32)
            h0n, c0n = cell(g0, c0)
            # Layer 1: z1 = h0 (lanes [64:128]) + h1 (lanes [0:64]) -> one fused dot.
            g1 = jnp.dot((h0n + h1).astype(jnp.bfloat16), w1,
                         preferred_element_type=jnp.float32) + b1
            h1n, c1n = cell(g1, c1)
            if pad_tail:
                valid = (tile * TT + t) < T
                h0n = jnp.where(valid, h0n, h0)
                c0n = jnp.where(valid, c0n, c0)
                h1n = jnp.where(valid, h1n, h1)
                c1n = jnp.where(valid, c1n, c1)
            return h0n, c0n, h1n, c1n

        carry = (h0_ref[...], c0_ref[...], h1_ref[...], c1_ref[...])
        h0, c0, h1, c1 = lax.fori_loop(0, TT, step, carry, unroll=unroll)
        h0_ref[...] = h0
        c0_ref[...] = c0
        h1_ref[...] = h1
        c1_ref[...] = c1

        @pl.when(tile == pl.num_programs(0) - 1)
        def _():
            out_ref[...] = (jnp.dot(h1.astype(jnp.bfloat16), wfc_ref[...],
                                    preferred_element_type=jnp.float32)
                            + bfc_ref[...]).astype(out_ref.dtype)

    return kernel


def prepare_params(raw_params):
    """Build fused, lane-padded, bf16 kernel weights from PyTorch-layout parameters."""
    (wih0, whh0, bih0, bhh0,
     wih1, whh1, bih1, bhh1,
     wfc, bfc) = [np.asarray(p, np.float32) for p in raw_params]
    H, I, O = HIDDEN_SIZE, INPUT_SIZE, OUTPUT_SIZE
    HP, OP, KX = GATE_BLOCK, PAD_LANES, X_LANES

    # Layer 0: gate values land in the UPPER half of each 128-lane gate block
    # (so h0/c0 live in lanes [64:128] with lanes [0:64] identically zero).
    w0x = np.zeros((KX, 4 * HP), np.float32)   # input projection (hoisted per tile)
    w0h = np.zeros((HP, 4 * HP), np.float32)   # recurrent projection (per step)
    b0 = np.zeros((1, 4 * HP), np.float32)
    for k, g in enumerate(GATE_ORDER):
        rows = slice(g * H, (g + 1) * H)
        col = slice(k * HP + 64, k * HP + 64 + H)
        w0x[0:I, col] = wih0[rows, :].T
        w0h[64:64 + H, col] = whh0[rows, :].T
        b0[0, col] = bih0[rows] + bhh0[rows]

    # Layer 1: z1 lanes [0:64] = h1 (recurrent), lanes [64:128] = h0 (input);
    # gate values land in the LOWER half (so h1/c1 live in lanes [0:64]).
    w1 = np.zeros((HP, 4 * HP), np.float32)
    b1 = np.zeros((1, 4 * HP), np.float32)
    for k, g in enumerate(GATE_ORDER):
        rows = slice(g * H, (g + 1) * H)
        col = slice(k * HP, k * HP + H)
        w1[0:H, col] = whh1[rows, :].T
        w1[64:64 + H, col] = wih1[rows, :].T
        b1[0, col] = bih1[rows] + bhh1[rows]

    # Final fc: h1 lives in lanes [0:64]; output padded to 128 lanes (lane-dense store).
    wf = np.zeros((HP, OP), np.float32)
    wf[0:H, 0:O] = wfc.T
    bf = np.zeros((1, OP), np.float32)
    bf[0, 0:O] = bfc

    return (jnp.asarray(w0x, jnp.bfloat16), jnp.asarray(w0h, jnp.bfloat16),
            jnp.asarray(b0, jnp.float32),
            jnp.asarray(w1, jnp.bfloat16), jnp.asarray(b1, jnp.float32),
            jnp.asarray(wf, jnp.bfloat16), jnp.asarray(bf, jnp.float32))


def lstm_multiple_output(x, kernel_params, *, time_tile=32):
    """x: (B, T, INPUT_SIZE) float32, batch-first like PyTorch. Returns (B, OUTPUT_SIZE)."""
    B, T, I = x.shape
    assert I == INPUT_SIZE
    Bp = ((B + 7) // 8) * 8                      # pad batch to full sublanes
    TT = min(time_tile, T)
    num_tiles = (T + TT - 1) // TT
    T_pad = num_tiles * TT

    w0x, w0h, b0, w1, b1, wf, bf = kernel_params

    # Time-major, batch-padded, lane-trimmed bf16 input, flattened to 2D (rows = t*Bp + b).
    x_tm = jnp.transpose(x, (1, 0, 2)).astype(jnp.bfloat16)          # (T, B, 18)
    x_in = jnp.zeros((T_pad, Bp, X_LANES), jnp.bfloat16)
    x_in = x_in.at[:T, :B, :INPUT_SIZE].set(x_tm)
    x_in = x_in.reshape(T_pad * Bp, X_LANES)

    kernel = _make_kernel(T, TT, Bp)

    # Explicit VMEM budget: x tile (x2 buffers) + xg scratch + weights + carries + headroom.
    x_block_bytes = TT * Bp * X_LANES * 2
    xg_bytes = TT * Bp * 4 * GATE_BLOCK * 4
    weight_bytes = sum(int(np.prod(a.shape)) * a.dtype.itemsize for a in kernel_params)
    carry_bytes = 6 * Bp * GATE_BLOCK * 4
    vmem_limit = int(2 * x_block_bytes + xg_bytes + 2 * weight_bytes
                     + carry_bytes + (4 << 20))
    vmem_limit = min(max(vmem_limit, 8 << 20), 100 << 20)

    single = pl.Buffered(1)   # constant blocks: no double-buffer VMEM waste
    const2d = lambda i: (0, 0)

    out = pl.pallas_call(
        kernel,
        out_shape=jax.ShapeDtypeStruct((Bp, PAD_LANES), jnp.float32),
        grid=(num_tiles,),
        in_specs=[
            # x is streamed one time-tile per grid step (default double-buffering so the
            # next tile's DMA overlaps the current tile's recurrence).
            pl.BlockSpec((TT * Bp, X_LANES), lambda i: (i, 0)),
            pl.BlockSpec(w0x.shape, const2d, pipeline_mode=single),
            pl.BlockSpec(w0h.shape, const2d, pipeline_mode=single),
            pl.BlockSpec(b0.shape, const2d, pipeline_mode=single),
            pl.BlockSpec(w1.shape, const2d, pipeline_mode=single),
            pl.BlockSpec(b1.shape, const2d, pipeline_mode=single),
            pl.BlockSpec(wf.shape, const2d, pipeline_mode=single),
            pl.BlockSpec(bf.shape, const2d, pipeline_mode=single),
        ],
        out_specs=pl.BlockSpec((Bp, PAD_LANES), const2d),
        scratch_shapes=[
            pltpu.VMEM((TT * Bp, 4 * GATE_BLOCK), jnp.float32),  # hoisted layer-0 x-gates
            pltpu.VMEM((Bp, GATE_BLOCK), jnp.float32),           # h0 carry
            pltpu.VMEM((Bp, GATE_BLOCK), jnp.float32),           # c0 carry
            pltpu.VMEM((Bp, GATE_BLOCK), jnp.float32),           # h1 carry
            pltpu.VMEM((Bp, GATE_BLOCK), jnp.float32),           # c1 carry
        ],
        compiler_params=pltpu.CompilerParams(
            dimension_semantics=("arbitrary",),     # sequential recurrence over time tiles
            vmem_limit_bytes=vmem_limit),
    )(x_in, w0x, w0h, b0, w1, b1, wf, bf)

    return out[:B, :OUTPUT_SIZE]


def init_params(key):
    """Deterministic init matching PyTorch nn.LSTM / nn.Linear parameter shapes."""
    H, I, O = HIDDEN_SIZE, INPUT_SIZE, OUTPUT_SIZE
    k = 1.0 / np.sqrt(H)
    keys = jax.random.split(key, 12)
    u = lambda kk, shape: jax.random.uniform(kk, shape, jnp.float32, -k, k)
    wih0 = u(keys[0], (4 * H, I))
    whh0 = u(keys[1], (4 * H, H))
    bih0 = u(keys[2], (4 * H,))
    bhh0 = u(keys[3], (4 * H,))
    wih1 = u(keys[4], (4 * H, H))
    whh1 = u(keys[5], (4 * H, H))
    bih1 = u(keys[6], (4 * H,))
    bhh1 = u(keys[7], (4 * H,))
    wfc = u(keys[8], (O, H))
    bfc = u(keys[9], (O,))
    return (wih0, whh0, bih0, bhh0, wih1, whh1, bih1, bhh1, wfc, bfc)


def _reference(x, raw_params):
    """Pure-JAX forward with the same bf16-weight / f32-accumulate numerics as the kernel."""
    (wih0, whh0, bih0, bhh0, wih1, whh1, bih1, bhh1, wfc, bfc) = raw_params
    H = HIDDEN_SIZE
    B, T, _ = x.shape
    bf16 = lambda a: a.astype(jnp.bfloat16)

    def dot(a, w):  # a: (B, K) f32, w: PyTorch layout (out, K)
        return jnp.dot(bf16(a), bf16(w).T, preferred_element_type=jnp.float32)

    def sig(v):
        return 0.5 * jnp.tanh(0.5 * v) + 0.5

    def cell(h, c, gates):
        i = sig(gates[:, 0 * H:1 * H])
        f = sig(gates[:, 1 * H:2 * H])
        g = jnp.tanh(gates[:, 2 * H:3 * H])
        o = sig(gates[:, 3 * H:4 * H])
        c = f * c + i * g
        return o * jnp.tanh(c), c

    h0 = c0 = h1 = c1 = jnp.zeros((B, H), jnp.float32)
    for t in range(T):
        xt = x[:, t, :]
        h0, c0 = cell(h0, c0, dot(xt, wih0) + dot(h0, whh0) + bih0 + bhh0)
        h1, c1 = cell(h1, c1, dot(h0, wih1) + dot(h1, whh1) + bih1 + bhh1)
    return dot(h1, wfc) + bfc


if __name__ == "__main__":
    key = jax.random.PRNGKey(0)
    kx, kp = jax.random.split(key)
    B, T = 2, 8
    x = jax.random.normal(kx, (B, T, INPUT_SIZE), jnp.float32)

    raw_params = init_params(kp)
    kernel_params = prepare_params(raw_params)

    out = lstm_multiple_output(x, kernel_params)
    out = jax.block_until_ready(out)

    ref = _reference(x, raw_params)
    assert out.shape == (B, OUTPUT_SIZE)
    np.testing.assert_allclose(np.asarray(out), np.asarray(ref), rtol=1e-3, atol=1e-3)

    print("KERNEL_OK")
</pallas_src>

<mosaic_0001>
module attributes {stable_mosaic.version = 11 : i64} {
  func.func @kernel(%arg0: i32, %arg1: memref<64x32xbf16, #tpu.memory_space<vmem>>, %arg2: memref<32x512xbf16, #tpu.memory_space<vmem>>, %arg3: memref<128x512xbf16, #tpu.memory_space<vmem>>, %arg4: memref<1x512xf32, #tpu.memory_space<vmem>>, %arg5: memref<128x512xbf16, #tpu.memory_space<vmem>>, %arg6: memref<1x512xf32, #tpu.memory_space<vmem>>, %arg7: memref<128x128xbf16, #tpu.memory_space<vmem>>, %arg8: memref<1x128xf32, #tpu.memory_space<vmem>>, %arg9: memref<8x128xf32, #tpu.memory_space<vmem>>, %arg10: memref<64x512xf32, #tpu.memory_space<vmem>>, %arg11: memref<8x128xf32, #tpu.memory_space<vmem>>, %arg12: memref<8x128xf32, #tpu.memory_space<vmem>>, %arg13: memref<8x128xf32, #tpu.memory_space<vmem>>, %arg14: memref<8x128xf32, #tpu.memory_space<vmem>>) attributes {dimension_semantics = [#tpu.dimension_semantics<arbitrary>], iteration_bounds = array<i64: 1>, scalar_prefetch = 0 : i64, scratch_operands = 5 : i64, tpu.core_type = #tpu.core_type<tc>, window_params = [{transform_indices = @transform_0, window_bounds = array<i64: 64, 32>}, {pipeline_mode = #tpu.pipeline_mode<synchronous>, transform_indices = @transform_1, window_bounds = array<i64: 32, 512>}, {pipeline_mode = #tpu.pipeline_mode<synchronous>, transform_indices = @transform_2, window_bounds = array<i64: 128, 512>}, {pipeline_mode = #tpu.pipeline_mode<synchronous>, transform_indices = @transform_3, window_bounds = array<i64: 1, 512>}, {pipeline_mode = #tpu.pipeline_mode<synchronous>, transform_indices = @transform_4, window_bounds = array<i64: 128, 512>}, {pipeline_mode = #tpu.pipeline_mode<synchronous>, transform_indices = @transform_5, window_bounds = array<i64: 1, 512>}, {pipeline_mode = #tpu.pipeline_mode<synchronous>, transform_indices = @transform_6, window_bounds = array<i64: 128, 128>}, {pipeline_mode = #tpu.pipeline_mode<synchronous>, transform_indices = @transform_7, window_bounds = array<i64: 1, 128>}, {pipeline_mode = #tpu.pipeline_mode<synchronous>, transform_indices = @transform_8, window_bounds = array<i64: 8, 128>}]} {
    %c0_i32 = arith.constant 0 : i32
    %0 = arith.cmpi eq, %arg0, %c0_i32 : i32
    %1 = arith.extui %0 : i1 to i32
    %c0_i32_0 = arith.constant 0 : i32
    %2 = arith.cmpi ne, %1, %c0_i32_0 : i32
    scf.if %2 {
      %cst_113 = arith.constant 0.000000e+00 : f32
      %408 = vector.broadcast %cst_113 : f32 to vector<8x128xf32>
      %c0_114 = arith.constant 0 : index
      %c0_115 = arith.constant 0 : index
      %409 = vector.load %arg11[%c0_114, %c0_115] : memref<8x128xf32, #tpu.memory_space<vmem>>, vector<8x128xf32>
      tpu.vector_store %arg11[%c0_114, %c0_115], %408 {strides = array<i32>} : memref<8x128xf32, #tpu.memory_space<vmem>>, vector<8x128xf32>,
      %c0_116 = arith.constant 0 : index
      %c0_117 = arith.constant 0 : index
      %410 = vector.load %arg12[%c0_116, %c0_117] : memref<8x128xf32, #tpu.memory_space<vmem>>, vector<8x128xf32>
      tpu.vector_store %arg12[%c0_116, %c0_117], %408 {strides = array<i32>} : memref<8x128xf32, #tpu.memory_space<vmem>>, vector<8x128xf32>,
      %c0_118 = arith.constant 0 : index
      %c0_119 = arith.constant 0 : index
      %411 = vector.load %arg13[%c0_118, %c0_119] : memref<8x128xf32, #tpu.memory_space<vmem>>, vector<8x128xf32>
      tpu.vector_store %arg13[%c0_118, %c0_119], %408 {strides = array<i32>} : memref<8x128xf32, #tpu.memory_space<vmem>>, vector<8x128xf32>,
      %c0_120 = arith.constant 0 : index
      %c0_121 = arith.constant 0 : index
      %412 = vector.load %arg14[%c0_120, %c0_121] : memref<8x128xf32, #tpu.memory_space<vmem>>, vector<8x128xf32>
      tpu.vector_store %arg14[%c0_120, %c0_121], %408 {strides = array<i32>} : memref<8x128xf32, #tpu.memory_space<vmem>>, vector<8x128xf32>,
    } else {
    }
    %c0 = arith.constant 0 : index
    %c0_1 = arith.constant 0 : index
    %3 = vector.load %arg1[%c0, %c0_1] : memref<64x32xbf16, #tpu.memory_space<vmem>>, vector<64x32xbf16>
    %c0_2 = arith.constant 0 : index
    %c0_3 = arith.constant 0 : index
    %4 = vector.load %arg2[%c0_2, %c0_3] : memref<32x512xbf16, #tpu.memory_space<vmem>>, vector<32x512xbf16>
    %cst = arith.constant dense<0.000000e+00> : vector<64x512xf32>
    %5 = tpu.matmul %3, %4, %cst {dimension_numbers = #tpu.dot_dimension_numbers<[1], [0], [0], [1], [0, 0, 1, 1], [], []>} : vector<64x32xbf16>, vector<32x512xbf16>, vector<64x512xf32> -> vector<64x512xf32>
    %c0_4 = arith.constant 0 : index
    %c0_5 = arith.constant 0 : index
    %6 = vector.load %arg4[%c0_4, %c0_5] : memref<1x512xf32, #tpu.memory_space<vmem>>, vector<1x512xf32>
    %7 = vector.broadcast %6 : vector<1x512xf32> to vector<64x512xf32>
    %8 = arith.addf %5, %7 : vector<64x512xf32>
    %c0_6 = arith.constant 0 : index
    %c0_7 = arith.constant 0 : index
    %9 = vector.load %arg10[%c0_6, %c0_7] : memref<64x512xf32, #tpu.memory_space<vmem>>, vector<64x512xf32>
    tpu.vector_store %arg10[%c0_6, %c0_7], %8 {strides = array<i32>} : memref<64x512xf32, #tpu.memory_space<vmem>>, vector<64x512xf32>,
    %c0_8 = arith.constant 0 : index
    %c0_9 = arith.constant 0 : index
    %10 = vector.load %arg3[%c0_8, %c0_9] : memref<128x512xbf16, #tpu.memory_space<vmem>>, vector<128x512xbf16>
    %c0_10 = arith.constant 0 : index
    %c0_11 = arith.constant 0 : index
    %11 = vector.load %arg5[%c0_10, %c0_11] : memref<128x512xbf16, #tpu.memory_space<vmem>>, vector<128x512xbf16>
    %c0_12 = arith.constant 0 : index
    %c0_13 = arith.constant 0 : index
    %12 = vector.load %arg6[%c0_12, %c0_13] : memref<1x512xf32, #tpu.memory_space<vmem>>, vector<1x512xf32>
    %c0_14 = arith.constant 0 : index
    %c0_15 = arith.constant 0 : index
    %13 = vector.load %arg11[%c0_14, %c0_15] : memref<8x128xf32, #tpu.memory_space<vmem>>, vector<8x128xf32>
    %c0_16 = arith.constant 0 : index
    %c0_17 = arith.constant 0 : index
    %14 = vector.load %arg12[%c0_16, %c0_17] : memref<8x128xf32, #tpu.memory_space<vmem>>, vector<8x128xf32>
    %c0_18 = arith.constant 0 : index
    %c0_19 = arith.constant 0 : index
    %15 = vector.load %arg13[%c0_18, %c0_19] : memref<8x128xf32, #tpu.memory_space<vmem>>, vector<8x128xf32>
    %c0_20 = arith.constant 0 : index
    %c0_21 = arith.constant 0 : index
    %16 = vector.load %arg14[%c0_20, %c0_21] : memref<8x128xf32, #tpu.memory_space<vmem>>, vector<8x128xf32>
    %c0_i32_22 = arith.constant 0 : i32
    %c8_i32 = arith.constant 8 : i32
    %17 = arith.muli %c0_i32_22, %c8_i32 : i32
    %18 = tpu.assume_multiple %17, 8 : i32
    %19 = arith.index_cast %18 : i32 to index
    %c0_23 = arith.constant 0 : index
    %20 = vector.load %arg10[%19, %c0_23] : memref<64x512xf32, #tpu.memory_space<vmem>>, vector<8x512xf32>
    %21 = arith.truncf %13 : vector<8x128xf32> to vector<8x128xbf16>
    %cst_24 = arith.constant dense<0.000000e+00> : vector<8x512xf32>
    %22 = tpu.matmul %21, %10, %cst_24 {dimension_numbers = #tpu.dot_dimension_numbers<[1], [0], [0], [1], [0, 0, 1, 1], [], []>} : vector<8x128xbf16>, vector<128x512xbf16>, vector<8x512xf32> -> vector<8x512xf32>
    %23 = arith.addf %20, %22 : vector<8x512xf32>
    %24 = vector.extract_strided_slice %23 {offsets = [0, 0], sizes = [8, 384], strides = [1, 1]} : vector<8x512xf32> to vector<8x384xf32>
    %cst_25 = arith.constant 5.000000e-01 : f32
    %25 = vector.broadcast %cst_25 : f32 to vector<8x384xf32>
    %26 = arith.mulf %25, %24 : vector<8x384xf32>
    %27 = math.tanh %26 : vector<8x384xf32>
    %cst_26 = arith.constant 5.000000e-01 : f32
    %28 = vector.broadcast %cst_26 : f32 to vector<8x384xf32>
    %29 = arith.mulf %28, %27 : vector<8x384xf32>
    %cst_27 = arith.constant 5.000000e-01 : f32
    %30 = vector.broadcast %cst_27 : f32 to vector<8x384xf32>
    %31 = arith.addf %29, %30 : vector<8x384xf32>
    %32 = vector.extract_strided_slice %31 {offsets = [0, 0], sizes = [8, 128], strides = [1, 1]} : vector<8x384xf32> to vector<8x128xf32>
    %33 = vector.extract_strided_slice %31 {offsets = [0, 128], sizes = [8, 128], strides = [1, 1]} : vector<8x384xf32> to vector<8x128xf32>
    %34 = vector.extract_strided_slice %31 {offsets = [0, 256], sizes = [8, 128], strides = [1, 1]} : vector<8x384xf32> to vector<8x128xf32>
    %35 = vector.extract_strided_slice %23 {offsets = [0, 384], sizes = [8, 128], strides = [1, 1]} : vector<8x512xf32> to vector<8x128xf32>
    %36 = math.tanh %35 : vector<8x128xf32>
    %37 = arith.mulf %33, %14 : vector<8x128xf32>
    %38 = arith.mulf %32, %36 : vector<8x128xf32>
    %39 = arith.addf %37, %38 : vector<8x128xf32>
    %40 = math.tanh %39 : vector<8x128xf32>
    %41 = arith.mulf %34, %40 : vector<8x128xf32>
    %42 = arith.addf %41, %15 : vector<8x128xf32>
    %43 = arith.truncf %42 : vector<8x128xf32> to vector<8x128xbf16>
    %cst_28 = arith.constant dense<0.000000e+00> : vector<8x512xf32>
    %44 = tpu.matmul %43, %11, %cst_28 {dimension_numbers = #tpu.dot_dimension_numbers<[1], [0], [0], [1], [0, 0, 1, 1], [], []>} : vector<8x128xbf16>, vector<128x512xbf16>, vector<8x512xf32> -> vector<8x512xf32>
    %45 = vector.broadcast %12 : vector<1x512xf32> to vector<8x512xf32>
    %46 = arith.addf %44, %45 : vector<8x512xf32>
    %47 = vector.extract_strided_slice %46 {offsets = [0, 0], sizes = [8, 384], strides = [1, 1]} : vector<8x512xf32> to vector<8x384xf32>
    %cst_29 = arith.constant 5.000000e-01 : f32
    %48 = vector.broadcast %cst_29 : f32 to vector<8x384xf32>
    %49 = arith.mulf %48, %47 : vector<8x384xf32>
    %50 = math.tanh %49 : vector<8x384xf32>
    %cst_30 = arith.constant 5.000000e-01 : f32
    %51 = vector.broadcast %cst_30 : f32 to vector<8x384xf32>
    %52 = arith.mulf %51, %50 : vector<8x384xf32>
    %cst_31 = arith.constant 5.000000e-01 : f32
    %53 = vector.broadcast %cst_31 : f32 to vector<8x384xf32>
    %54 = arith.addf %52, %53 : vector<8x384xf32>
    %55 = vector.extract_strided_slice %54 {offsets = [0, 0], sizes = [8, 128], strides = [1, 1]} : vector<8x384xf32> to vector<8x128xf32>
    %56 = vector.extract_strided_slice %54 {offsets = [0, 128], sizes = [8, 128], strides = [1, 1]} : vector<8x384xf32> to vector<8x128xf32>
    %57 = vector.extract_strided_slice %54 {offsets = [0, 256], sizes = [8, 128], strides = [1, 1]} : vector<8x384xf32> to vector<8x128xf32>
    %58 = vector.extract_strided_slice %46 {offsets = [0, 384], sizes = [8, 128], strides = [1, 1]} : vector<8x512xf32> to vector<8x128xf32>
    %59 = math.tanh %58 : vector<8x128xf32>
    %60 = arith.mulf %56, %16 : vector<8x128xf32>
    %61 = arith.mulf %55, %59 : vector<8x128xf32>
    %62 = arith.addf %60, %61 : vector<8x128xf32>
    %63 = math.tanh %62 : vector<8x128xf32>
    %64 = arith.mulf %57, %63 : vector<8x128xf32>
    %c1_i32 = arith.constant 1 : i32
    %c8_i32_32 = arith.constant 8 : i32
    %65 = arith.muli %c1_i32, %c8_i32_32 : i32
    %66 = tpu.assume_multiple %65, 8 : i32
    %67 = arith.index_cast %66 : i32 to index
    %c0_33 = arith.constant 0 : index
    %68 = vector.load %arg10[%67, %c0_33] : memref<64x512xf32, #tpu.memory_space<vmem>>, vector<8x512xf32>
    %69 = arith.truncf %41 : vector<8x128xf32> to vector<8x128xbf16>
    %cst_34 = arith.constant dense<0.000000e+00> : vector<8x512xf32>
    %70 = tpu.matmul %69, %10, %cst_34 {dimension_numbers = #tpu.dot_dimension_numbers<[1], [0], [0], [1], [0, 0, 1, 1], [], []>} : vector<8x128xbf16>, vector<128x512xbf16>, vector<8x512xf32> -> vector<8x512xf32>
    %71 = arith.addf %68, %70 : vector<8x512xf32>
    %72 = vector.extract_strided_slice %71 {offsets = [0, 0], sizes = [8, 384], strides = [1, 1]} : vector<8x512xf32> to vector<8x384xf32>
    %cst_35 = arith.constant 5.000000e-01 : f32
    %73 = vector.broadcast %cst_35 : f32 to vector<8x384xf32>
    %74 = arith.mulf %73, %72 : vector<8x384xf32>
    %75 = math.tanh %74 : vector<8x384xf32>
    %cst_36 = arith.constant 5.000000e-01 : f32
    %76 = vector.broadcast %cst_36 : f32 to vector<8x384xf32>
    %77 = arith.mulf %76, %75 : vector<8x384xf32>
    %cst_37 = arith.constant 5.000000e-01 : f32
    %78 = vector.broadcast %cst_37 : f32 to vector<8x384xf32>
    %79 = arith.addf %77, %78 : vector<8x384xf32>
    %80 = vector.extract_strided_slice %79 {offsets = [0, 0], sizes = [8, 128], strides = [1, 1]} : vector<8x384xf32> to vector<8x128xf32>
    %81 = vector.extract_strided_slice %79 {offsets = [0, 128], sizes = [8, 128], strides = [1, 1]} : vector<8x384xf32> to vector<8x128xf32>
    %82 = vector.extract_strided_slice %79 {offsets = [0, 256], sizes = [8, 128], strides = [1, 1]} : vector<8x384xf32> to vector<8x128xf32>
    %83 = vector.extract_strided_slice %71 {offsets = [0, 384], sizes = [8, 128], strides = [1, 1]} : vector<8x512xf32> to vector<8x128xf32>
    %84 = math.tanh %83 : vector<8x128xf32>
    %85 = arith.mulf %81, %39 : vector<8x128xf32>
    %86 = arith.mulf %80, %84 : vector<8x128xf32>
    %87 = arith.addf %85, %86 : vector<8x128xf32>
    %88 = math.tanh %87 : vector<8x128xf32>
    %89 = arith.mulf %82, %88 : vector<8x128xf32>
    %90 = arith.addf %89, %64 : vector<8x128xf32>
    %91 = arith.truncf %90 : vector<8x128xf32> to vector<8x128xbf16>
    %cst_38 = arith.constant dense<0.000000e+00> : vector<8x512xf32>
    %92 = tpu.matmul %91, %11, %cst_38 {dimension_numbers = #tpu.dot_dimension_numbers<[1], [0], [0], [1], [0, 0, 1, 1], [], []>} : vector<8x128xbf16>, vector<128x512xbf16>, vector<8x512xf32> -> vector<8x512xf32>
    %93 = vector.broadcast %12 : vector<1x512xf32> to vector<8x512xf32>
    %94 = arith.addf %92, %93 : vector<8x512xf32>
    %95 = vector.extract_strided_slice %94 {offsets = [0, 0], sizes = [8, 384], strides = [1, 1]} : vector<8x512xf32> to vector<8x384xf32>
    %cst_39 = arith.constant 5.000000e-01 : f32
    %96 = vector.broadcast %cst_39 : f32 to vector<8x384xf32>
    %97 = arith.mulf %96, %95 : vector<8x384xf32>
    %98 = math.tanh %97 : vector<8x384xf32>
    %cst_40 = arith.constant 5.000000e-01 : f32
    %99 = vector.broadcast %cst_40 : f32 to vector<8x384xf32>
    %100 = arith.mulf %99, %98 : vector<8x384xf32>
    %cst_41 = arith.constant 5.000000e-01 : f32
    %101 = vector.broadcast %cst_41 : f32 to vector<8x384xf32>
    %102 = arith.addf %100, %101 : vector<8x384xf32>
    %103 = vector.extract_strided_slice %102 {offsets = [0, 0], sizes = [8, 128], strides = [1, 1]} : vector<8x384xf32> to vector<8x128xf32>
    %104 = vector.extract_strided_slice %102 {offsets = [0, 128], sizes = [8, 128], strides = [1, 1]} : vector<8x384xf32> to vector<8x128xf32>
    %105 = vector.extract_strided_slice %102 {offsets = [0, 256], sizes = [8, 128], strides = [1, 1]} : vector<8x384xf32> to vector<8x128xf32>
    %106 = vector.extract_strided_slice %94 {offsets = [0, 384], sizes = [8, 128], strides = [1, 1]} : vector<8x512xf32> to vector<8x128xf32>
    %107 = math.tanh %106 : vector<8x128xf32>
    %108 = arith.mulf %104, %62 : vector<8x128xf32>
    %109 = arith.mulf %103, %107 : vector<8x128xf32>
    %110 = arith.addf %108, %109 : vector<8x128xf32>
    %111 = math.tanh %110 : vector<8x128xf32>
    %112 = arith.mulf %105, %111 : vector<8x128xf32>
    %c2_i32 = arith.constant 2 : i32
    %c8_i32_42 = arith.constant 8 : i32
    %113 = arith.muli %c2_i32, %c8_i32_42 : i32
    %114 = tpu.assume_multiple %113, 8 : i32
    %115 = arith.index_cast %114 : i32 to index
    %c0_43 = arith.constant 0 : index
    %116 = vector.load %arg10[%115, %c0_43] : memref<64x512xf32, #tpu.memory_space<vmem>>, vector<8x512xf32>
    %117 = arith.truncf %89 : vector<8x128xf32> to vector<8x128xbf16>
    %cst_44 = arith.constant dense<0.000000e+00> : vector<8x512xf32>
    %118 = tpu.matmul %117, %10, %cst_44 {dimension_numbers = #tpu.dot_dimension_numbers<[1], [0], [0], [1], [0, 0, 1, 1], [], []>} : vector<8x128xbf16>, vector<128x512xbf16>, vector<8x512xf32> -> vector<8x512xf32>
    %119 = arith.addf %116, %118 : vector<8x512xf32>
    %120 = vector.extract_strided_slice %119 {offsets = [0, 0], sizes = [8, 384], strides = [1, 1]} : vector<8x512xf32> to vector<8x384xf32>
    %cst_45 = arith.constant 5.000000e-01 : f32
    %121 = vector.broadcast %cst_45 : f32 to vector<8x384xf32>
    %122 = arith.mulf %121, %120 : vector<8x384xf32>
    %123 = math.tanh %122 : vector<8x384xf32>
    %cst_46 = arith.constant 5.000000e-01 : f32
    %124 = vector.broadcast %cst_46 : f32 to vector<8x384xf32>
    %125 = arith.mulf %124, %123 : vector<8x384xf32>
    %cst_47 = arith.constant 5.000000e-01 : f32
    %126 = vector.broadcast %cst_47 : f32 to vector<8x384xf32>
    %127 = arith.addf %125, %126 : vector<8x384xf32>
    %128 = vector.extract_strided_slice %127 {offsets = [0, 0], sizes = [8, 128], strides = [1, 1]} : vector<8x384xf32> to vector<8x128xf32>
    %129 = vector.extract_strided_slice %127 {offsets = [0, 128], sizes = [8, 128], strides = [1, 1]} : vector<8x384xf32> to vector<8x128xf32>
    %130 = vector.extract_strided_slice %127 {offsets = [0, 256], sizes = [8, 128], strides = [1, 1]} : vector<8x384xf32> to vector<8x128xf32>
    %131 = vector.extract_strided_slice %119 {offsets = [0, 384], sizes = [8, 128], strides = [1, 1]} : vector<8x512xf32> to vector<8x128xf32>
    %132 = math.tanh %131 : vector<8x128xf32>
    %133 = arith.mulf %129, %87 : vector<8x128xf32>
    %134 = arith.mulf %128, %132 : vector<8x128xf32>
    %135 = arith.addf %133, %134 : vector<8x128xf32>
    %136 = math.tanh %135 : vector<8x128xf32>
    %137 = arith.mulf %130, %136 : vector<8x128xf32>
    %138 = arith.addf %137, %112 : vector<8x128xf32>
    %139 = arith.truncf %138 : vector<8x128xf32> to vector<8x128xbf16>
    %cst_48 = arith.constant dense<0.000000e+00> : vector<8x512xf32>
    %140 = tpu.matmul %139, %11, %cst_48 {dimension_numbers = #tpu.dot_dimension_numbers<[1], [0], [0], [1], [0, 0, 1, 1], [], []>} : vector<8x128xbf16>, vector<128x512xbf16>, vector<8x512xf32> -> vector<8x512xf32>
    %141 = vector.broadcast %12 : vector<1x512xf32> to vector<8x512xf32>
    %142 = arith.addf %140, %141 : vector<8x512xf32>
    %143 = vector.extract_strided_slice %142 {offsets = [0, 0], sizes = [8, 384], strides = [1, 1]} : vector<8x512xf32> to vector<8x384xf32>
    %cst_49 = arith.constant 5.000000e-01 : f32
    %144 = vector.broadcast %cst_49 : f32 to vector<8x384xf32>
    %145 = arith.mulf %144, %143 : vector<8x384xf32>
    %146 = math.tanh %145 : vector<8x384xf32>
    %cst_50 = arith.constant 5.000000e-01 : f32
    %147 = vector.broadcast %cst_50 : f32 to vector<8x384xf32>
    %148 = arith.mulf %147, %146 : vector<8x384xf32>
    %cst_51 = arith.constant 5.000000e-01 : f32
    %149 = vector.broadcast %cst_51 : f32 to vector<8x384xf32>
    %150 = arith.addf %148, %149 : vector<8x384xf32>
    %151 = vector.extract_strided_slice %150 {offsets = [0, 0], sizes = [8, 128], strides = [1, 1]} : vector<8x384xf32> to vector<8x128xf32>
    %152 = vector.extract_strided_slice %150 {offsets = [0, 128], sizes = [8, 128], strides = [1, 1]} : vector<8x384xf32> to vector<8x128xf32>
    %153 = vector.extract_strided_slice %150 {offsets = [0, 256], sizes = [8, 128], strides = [1, 1]} : vector<8x384xf32> to vector<8x128xf32>
    %154 = vector.extract_strided_slice %142 {offsets = [0, 384], sizes = [8, 128], strides = [1, 1]} : vector<8x512xf32> to vector<8x128xf32>
    %155 = math.tanh %154 : vector<8x128xf32>
    %156 = arith.mulf %152, %110 : vector<8x128xf32>
    %157 = arith.mulf %151, %155 : vector<8x128xf32>
    %158 = arith.addf %156, %157 : vector<8x128xf32>
    %159 = math.tanh %158 : vector<8x128xf32>
    %160 = arith.mulf %153, %159 : vector<8x128xf32>
    %c3_i32 = arith.constant 3 : i32
    %c8_i32_52 = arith.constant 8 : i32
    %161 = arith.muli %c3_i32, %c8_i32_52 : i32
    %162 = tpu.assume_multiple %161, 8 : i32
    %163 = arith.index_cast %162 : i32 to index
    %c0_53 = arith.constant 0 : index
    %164 = vector.load %arg10[%163, %c0_53] : memref<64x512xf32, #tpu.memory_space<vmem>>, vector<8x512xf32>
    %165 = arith.truncf %137 : vector<8x128xf32> to vector<8x128xbf16>
    %cst_54 = arith.constant dense<0.000000e+00> : vector<8x512xf32>
    %166 = tpu.matmul %165, %10, %cst_54 {dimension_numbers = #tpu.dot_dimension_numbers<[1], [0], [0], [1], [0, 0, 1, 1], [], []>} : vector<8x128xbf16>, vector<128x512xbf16>, vector<8x512xf32> -> vector<8x512xf32>
    %167 = arith.addf %164, %166 : vector<8x512xf32>
    %168 = vector.extract_strided_slice %167 {offsets = [0, 0], sizes = [8, 384], strides = [1, 1]} : vector<8x512xf32> to vector<8x384xf32>
    %cst_55 = arith.constant 5.000000e-01 : f32
    %169 = vector.broadcast %cst_55 : f32 to vector<8x384xf32>
    %170 = arith.mulf %169, %168 : vector<8x384xf32>
    %171 = math.tanh %170 : vector<8x384xf32>
    %cst_56 = arith.constant 5.000000e-01 : f32
    %172 = vector.broadcast %cst_56 : f32 to vector<8x384xf32>
    %173 = arith.mulf %172, %171 : vector<8x384xf32>
    %cst_57 = arith.constant 5.000000e-01 : f32
    %174 = vector.broadcast %cst_57 : f32 to vector<8x384xf32>
    %175 = arith.addf %173, %174 : vector<8x384xf32>
    %176 = vector.extract_strided_slice %175 {offsets = [0, 0], sizes = [8, 128], strides = [1, 1]} : vector<8x384xf32> to vector<8x128xf32>
    %177 = vector.extract_strided_slice %175 {offsets = [0, 128], sizes = [8, 128], strides = [1, 1]} : vector<8x384xf32> to vector<8x128xf32>
    %178 = vector.extract_strided_slice %175 {offsets = [0, 256], sizes = [8, 128], strides = [1, 1]} : vector<8x384xf32> to vector<8x128xf32>
    %179 = vector.extract_strided_slice %167 {offsets = [0, 384], sizes = [8, 128], strides = [1, 1]} : vector<8x512xf32> to vector<8x128xf32>
    %180 = math.tanh %179 : vector<8x128xf32>
    %181 = arith.mulf %177, %135 : vector<8x128xf32>
    %182 = arith.mulf %176, %180 : vector<8x128xf32>
    %183 = arith.addf %181, %182 : vector<8x128xf32>
    %184 = math.tanh %183 : vector<8x128xf32>
    %185 = arith.mulf %178, %184 : vector<8x128xf32>
    %186 = arith.addf %185, %160 : vector<8x128xf32>
    %187 = arith.truncf %186 : vector<8x128xf32> to vector<8x128xbf16>
    %cst_58 = arith.constant dense<0.000000e+00> : vector<8x512xf32>
    %188 = tpu.matmul %187, %11, %cst_58 {dimension_numbers = #tpu.dot_dimension_numbers<[1], [0], [0], [1], [0, 0, 1, 1], [], []>} : vector<8x128xbf16>, vector<128x512xbf16>, vector<8x512xf32> -> vector<8x512xf32>
    %189 = vector.broadcast %12 : vector<1x512xf32> to vector<8x512xf32>
    %190 = arith.addf %188, %189 : vector<8x512xf32>
    %191 = vector.extract_strided_slice %190 {offsets = [0, 0], sizes = [8, 384], strides = [1, 1]} : vector<8x512xf32> to vector<8x384xf32>
    %cst_59 = arith.constant 5.000000e-01 : f32
    %192 = vector.broadcast %cst_59 : f32 to vector<8x384xf32>
    %193 = arith.mulf %192, %191 : vector<8x384xf32>
    %194 = math.tanh %193 : vector<8x384xf32>
    %cst_60 = arith.constant 5.000000e-01 : f32
    %195 = vector.broadcast %cst_60 : f32 to vector<8x384xf32>
    %196 = arith.mulf %195, %194 : vector<8x384xf32>
    %cst_61 = arith.constant 5.000000e-01 : f32
    %197 = vector.broadcast %cst_61 : f32 to vector<8x384xf32>
    %198 = arith.addf %196, %197 : vector<8x384xf32>
    %199 = vector.extract_strided_slice %198 {offsets = [0, 0], sizes = [8, 128], strides = [1, 1]} : vector<8x384xf32> to vector<8x128xf32>
    %200 = vector.extract_strided_slice %198 {offsets = [0, 128], sizes = [8, 128], strides = [1, 1]} : vector<8x384xf32> to vector<8x128xf32>
    %201 = vector.extract_strided_slice %198 {offsets = [0, 256], sizes = [8, 128], strides = [1, 1]} : vector<8x384xf32> to vector<8x128xf32>
    %202 = vector.extract_strided_slice %190 {offsets = [0, 384], sizes = [8, 128], strides = [1, 1]} : vector<8x512xf32> to vector<8x128xf32>
    %203 = math.tanh %202 : vector<8x128xf32>
    %204 = arith.mulf %200, %158 : vector<8x128xf32>
    %205 = arith.mulf %199, %203 : vector<8x128xf32>
    %206 = arith.addf %204, %205 : vector<8x128xf32>
    %207 = math.tanh %206 : vector<8x128xf32>
    %208 = arith.mulf %201, %207 : vector<8x128xf32>
    %c4_i32 = arith.constant 4 : i32
    %c8_i32_62 = arith.constant 8 : i32
    %209 = arith.muli %c4_i32, %c8_i32_62 : i32
    %210 = tpu.assume_multiple %209, 8 : i32
    %211 = arith.index_cast %210 : i32 to index
    %c0_63 = arith.constant 0 : index
    %212 = vector.load %arg10[%211, %c0_63] : memref<64x512xf32, #tpu.memory_space<vmem>>, vector<8x512xf32>
    %213 = arith.truncf %185 : vector<8x128xf32> to vector<8x128xbf16>
    %cst_64 = arith.constant dense<0.000000e+00> : vector<8x512xf32>
    %214 = tpu.matmul %213, %10, %cst_64 {dimension_numbers = #tpu.dot_dimension_numbers<[1], [0], [0], [1], [0, 0, 1, 1], [], []>} : vector<8x128xbf16>, vector<128x512xbf16>, vector<8x512xf32> -> vector<8x512xf32>
    %215 = arith.addf %212, %214 : vector<8x512xf32>
    %216 = vector.extract_strided_slice %215 {offsets = [0, 0], sizes = [8, 384], strides = [1, 1]} : vector<8x512xf32> to vector<8x384xf32>
    %cst_65 = arith.constant 5.000000e-01 : f32
    %217 = vector.broadcast %cst_65 : f32 to vector<8x384xf32>
    %218 = arith.mulf %217, %216 : vector<8x384xf32>
    %219 = math.tanh %218 : vector<8x384xf32>
    %cst_66 = arith.constant 5.000000e-01 : f32
    %220 = vector.broadcast %cst_66 : f32 to vector<8x384xf32>
    %221 = arith.mulf %220, %219 : vector<8x384xf32>
    %cst_67 = arith.constant 5.000000e-01 : f32
    %222 = vector.broadcast %cst_67 : f32 to vector<8x384xf32>
    %223 = arith.addf %221, %222 : vector<8x384xf32>
    %224 = vector.extract_strided_slice %223 {offsets = [0, 0], sizes = [8, 128], strides = [1, 1]} : vector<8x384xf32> to vector<8x128xf32>
    %225 = vector.extract_strided_slice %223 {offsets = [0, 128], sizes = [8, 128], strides = [1, 1]} : vector<8x384xf32> to vector<8x128xf32>
    %226 = vector.extract_strided_slice %223 {offsets = [0, 256], sizes = [8, 128], strides = [1, 1]} : vector<8x384xf32> to vector<8x128xf32>
    %227 = vector.extract_strided_slice %215 {offsets = [0, 384], sizes = [8, 128], strides = [1, 1]} : vector<8x512xf32> to vector<8x128xf32>
    %228 = math.tanh %227 : vector<8x128xf32>
    %229 = arith.mulf %225, %183 : vector<8x128xf32>
    %230 = arith.mulf %224, %228 : vector<8x128xf32>
    %231 = arith.addf %229, %230 : vector<8x128xf32>
    %232 = math.tanh %231 : vector<8x128xf32>
    %233 = arith.mulf %226, %232 : vector<8x128xf32>
    %234 = arith.addf %233, %208 : vector<8x128xf32>
    %235 = arith.truncf %234 : vector<8x128xf32> to vector<8x128xbf16>
    %cst_68 = arith.constant dense<0.000000e+00> : vector<8x512xf32>
    %236 = tpu.matmul %235, %11, %cst_68 {dimension_numbers = #tpu.dot_dimension_numbers<[1], [0], [0], [1], [0, 0, 1, 1], [], []>} : vector<8x128xbf16>, vector<128x512xbf16>, vector<8x512xf32> -> vector<8x512xf32>
    %237 = vector.broadcast %12 : vector<1x512xf32> to vector<8x512xf32>
    %238 = arith.addf %236, %237 : vector<8x512xf32>
    %239 = vector.extract_strided_slice %238 {offsets = [0, 0], sizes = [8, 384], strides = [1, 1]} : vector<8x512xf32> to vector<8x384xf32>
    %cst_69 = arith.constant 5.000000e-01 : f32
    %240 = vector.broadcast %cst_69 : f32 to vector<8x384xf32>
    %241 = arith.mulf %240, %239 : vector<8x384xf32>
    %242 = math.tanh %241 : vector<8x384xf32>
    %cst_70 = arith.constant 5.000000e-01 : f32
    %243 = vector.broadcast %cst_70 : f32 to vector<8x384xf32>
    %244 = arith.mulf %243, %242 : vector<8x384xf32>
    %cst_71 = arith.constant 5.000000e-01 : f32
    %245 = vector.broadcast %cst_71 : f32 to vector<8x384xf32>
    %246 = arith.addf %244, %245 : vector<8x384xf32>
    %247 = vector.extract_strided_slice %246 {offsets = [0, 0], sizes = [8, 128], strides = [1, 1]} : vector<8x384xf32> to vector<8x128xf32>
    %248 = vector.extract_strided_slice %246 {offsets = [0, 128], sizes = [8, 128], strides = [1, 1]} : vector<8x384xf32> to vector<8x128xf32>
    %249 = vector.extract_strided_slice %246 {offsets = [0, 256], sizes = [8, 128], strides = [1, 1]} : vector<8x384xf32> to vector<8x128xf32>
    %250 = vector.extract_strided_slice %238 {offsets = [0, 384], sizes = [8, 128], strides = [1, 1]} : vector<8x512xf32> to vector<8x128xf32>
    %251 = math.tanh %250 : vector<8x128xf32>
    %252 = arith.mulf %248, %206 : vector<8x128xf32>
    %253 = arith.mulf %247, %251 : vector<8x128xf32>
    %254 = arith.addf %252, %253 : vector<8x128xf32>
    %255 = math.tanh %254 : vector<8x128xf32>
    %256 = arith.mulf %249, %255 : vector<8x128xf32>
    %c5_i32 = arith.constant 5 : i32
    %c8_i32_72 = arith.constant 8 : i32
    %257 = arith.muli %c5_i32, %c8_i32_72 : i32
    %258 = tpu.assume_multiple %257, 8 : i32
    %259 = arith.index_cast %258 : i32 to index
    %c0_73 = arith.constant 0 : index
    %260 = vector.load %arg10[%259, %c0_73] : memref<64x512xf32, #tpu.memory_space<vmem>>, vector<8x512xf32>
    %261 = arith.truncf %233 : vector<8x128xf32> to vector<8x128xbf16>
    %cst_74 = arith.constant dense<0.000000e+00> : vector<8x512xf32>
    %262 = tpu.matmul %261, %10, %cst_74 {dimension_numbers = #tpu.dot_dimension_numbers<[1], [0], [0], [1], [0, 0, 1, 1], [], []>} : vector<8x128xbf16>, vector<128x512xbf16>, vector<8x512xf32> -> vector<8x512xf32>
    %263 = arith.addf %260, %262 : vector<8x512xf32>
    %264 = vector.extract_strided_slice %263 {offsets = [0, 0], sizes = [8, 384], strides = [1, 1]} : vector<8x512xf32> to vector<8x384xf32>
    %cst_75 = arith.constant 5.000000e-01 : f32
    %265 = vector.broadcast %cst_75 : f32 to vector<8x384xf32>
    %266 = arith.mulf %265, %264 : vector<8x384xf32>
    %267 = math.tanh %266 : vector<8x384xf32>
    %cst_76 = arith.constant 5.000000e-01 : f32
    %268 = vector.broadcast %cst_76 : f32 to vector<8x384xf32>
    %269 = arith.mulf %268, %267 : vector<8x384xf32>
    %cst_77 = arith.constant 5.000000e-01 : f32
    %270 = vector.broadcast %cst_77 : f32 to vector<8x384xf32>
    %271 = arith.addf %269, %270 : vector<8x384xf32>
    %272 = vector.extract_strided_slice %271 {offsets = [0, 0], sizes = [8, 128], strides = [1, 1]} : vector<8x384xf32> to vector<8x128xf32>
    %273 = vector.extract_strided_slice %271 {offsets = [0, 128], sizes = [8, 128], strides = [1, 1]} : vector<8x384xf32> to vector<8x128xf32>
    %274 = vector.extract_strided_slice %271 {offsets = [0, 256], sizes = [8, 128], strides = [1, 1]} : vector<8x384xf32> to vector<8x128xf32>
    %275 = vector.extract_strided_slice %263 {offsets = [0, 384], sizes = [8, 128], strides = [1, 1]} : vector<8x512xf32> to vector<8x128xf32>
    %276 = math.tanh %275 : vector<8x128xf32>
    %277 = arith.mulf %273, %231 : vector<8x128xf32>
    %278 = arith.mulf %272, %276 : vector<8x128xf32>
    %279 = arith.addf %277, %278 : vector<8x128xf32>
    %280 = math.tanh %279 : vector<8x128xf32>
    %281 = arith.mulf %274, %280 : vector<8x128xf32>
    %282 = arith.addf %281, %256 : vector<8x128xf32>
    %283 = arith.truncf %282 : vector<8x128xf32> to vector<8x128xbf16>
    %cst_78 = arith.constant dense<0.000000e+00> : vector<8x512xf32>
    %284 = tpu.matmul %283, %11, %cst_78 {dimension_numbers = #tpu.dot_dimension_numbers<[1], [0], [0], [1], [0, 0, 1, 1], [], []>} : vector<8x128xbf16>, vector<128x512xbf16>, vector<8x512xf32> -> vector<8x512xf32>
    %285 = vector.broadcast %12 : vector<1x512xf32> to vector<8x512xf32>
    %286 = arith.addf %284, %285 : vector<8x512xf32>
    %287 = vector.extract_strided_slice %286 {offsets = [0, 0], sizes = [8, 384], strides = [1, 1]} : vector<8x512xf32> to vector<8x384xf32>
    %cst_79 = arith.constant 5.000000e-01 : f32
    %288 = vector.broadcast %cst_79 : f32 to vector<8x384xf32>
    %289 = arith.mulf %288, %287 : vector<8x384xf32>
    %290 = math.tanh %289 : vector<8x384xf32>
    %cst_80 = arith.constant 5.000000e-01 : f32
    %291 = vector.broadcast %cst_80 : f32 to vector<8x384xf32>
    %292 = arith.mulf %291, %290 : vector<8x384xf32>
    %cst_81 = arith.constant 5.000000e-01 : f32
    %293 = vector.broadcast %cst_81 : f32 to vector<8x384xf32>
    %294 = arith.addf %292, %293 : vector<8x384xf32>
    %295 = vector.extract_strided_slice %294 {offsets = [0, 0], sizes = [8, 128], strides = [1, 1]} : vector<8x384xf32> to vector<8x128xf32>
    %296 = vector.extract_strided_slice %294 {offsets = [0, 128], sizes = [8, 128], strides = [1, 1]} : vector<8x384xf32> to vector<8x128xf32>
    %297 = vector.extract_strided_slice %294 {offsets = [0, 256], sizes = [8, 128], strides = [1, 1]} : vector<8x384xf32> to vector<8x128xf32>
    %298 = vector.extract_strided_slice %286 {offsets = [0, 384], sizes = [8, 128], strides = [1, 1]} : vector<8x512xf32> to vector<8x128xf32>
    %299 = math.tanh %298 : vector<8x128xf32>
    %300 = arith.mulf %296, %254 : vector<8x128xf32>
    %301 = arith.mulf %295, %299 : vector<8x128xf32>
    %302 = arith.addf %300, %301 : vector<8x128xf32>
    %303 = math.tanh %302 : vector<8x128xf32>
    %304 = arith.mulf %297, %303 : vector<8x128xf32>
    %c6_i32 = arith.constant 6 : i32
    %c8_i32_82 = arith.constant 8 : i32
    %305 = arith.muli %c6_i32, %c8_i32_82 : i32
    %306 = tpu.assume_multiple %305, 8 : i32
    %307 = arith.index_cast %306 : i32 to index
    %c0_83 = arith.constant 0 : index
    %308 = vector.load %arg10[%307, %c0_83] : memref<64x512xf32, #tpu.memory_space<vmem>>, vector<8x512xf32>
    %309 = arith.truncf %281 : vector<8x128xf32> to vector<8x128xbf16>
    %cst_84 = arith.constant dense<0.000000e+00> : vector<8x512xf32>
    %310 = tpu.matmul %309, %10, %cst_84 {dimension_numbers = #tpu.dot_dimension_numbers<[1], [0], [0], [1], [0, 0, 1, 1], [], []>} : vector<8x128xbf16>, vector<128x512xbf16>, vector<8x512xf32> -> vector<8x512xf32>
    %311 = arith.addf %308, %310 : vector<8x512xf32>
    %312 = vector.extract_strided_slice %311 {offsets = [0, 0], sizes = [8, 384], strides = [1, 1]} : vector<8x512xf32> to vector<8x384xf32>
    %cst_85 = arith.constant 5.000000e-01 : f32
    %313 = vector.broadcast %cst_85 : f32 to vector<8x384xf32>
    %314 = arith.mulf %313, %312 : vector<8x384xf32>
    %315 = math.tanh %314 : vector<8x384xf32>
    %cst_86 = arith.constant 5.000000e-01 : f32
    %316 = vector.broadcast %cst_86 : f32 to vector<8x384xf32>
    %317 = arith.mulf %316, %315 : vector<8x384xf32>
    %cst_87 = arith.constant 5.000000e-01 : f32
    %318 = vector.broadcast %cst_87 : f32 to vector<8x384xf32>
    %319 = arith.addf %317, %318 : vector<8x384xf32>
    %320 = vector.extract_strided_slice %319 {offsets = [0, 0], sizes = [8, 128], strides = [1, 1]} : vector<8x384xf32> to vector<8x128xf32>
    %321 = vector.extract_strided_slice %319 {offsets = [0, 128], sizes = [8, 128], strides = [1, 1]} : vector<8x384xf32> to vector<8x128xf32>
    %322 = vector.extract_strided_slice %319 {offsets = [0, 256], sizes = [8, 128], strides = [1, 1]} : vector<8x384xf32> to vector<8x128xf32>
    %323 = vector.extract_strided_slice %311 {offsets = [0, 384], sizes = [8, 128], strides = [1, 1]} : vector<8x512xf32> to vector<8x128xf32>
    %324 = math.tanh %323 : vector<8x128xf32>
    %325 = arith.mulf %321, %279 : vector<8x128xf32>
    %326 = arith.mulf %320, %324 : vector<8x128xf32>
    %327 = arith.addf %325, %326 : vector<8x128xf32>
    %328 = math.tanh %327 : vector<8x128xf32>
    %329 = arith.mulf %322, %328 : vector<8x128xf32>
    %330 = arith.addf %329, %304 : vector<8x128xf32>
    %331 = arith.truncf %330 : vector<8x128xf32> to vector<8x128xbf16>
    %cst_88 = arith.constant dense<0.000000e+00> : vector<8x512xf32>
    %332 = tpu.matmul %331, %11, %cst_88 {dimension_numbers = #tpu.dot_dimension_numbers<[1], [0], [0], [1], [0, 0, 1, 1], [], []>} : vector<8x128xbf16>, vector<128x512xbf16>, vector<8x512xf32> -> vector<8x512xf32>
    %333 = vector.broadcast %12 : vector<1x512xf32> to vector<8x512xf32>
    %334 = arith.addf %332, %333 : vector<8x512xf32>
    %335 = vector.extract_strided_slice %334 {offsets = [0, 0], sizes = [8, 384], strides = [1, 1]} : vector<8x512xf32> to vector<8x384xf32>
    %cst_89 = arith.constant 5.000000e-01 : f32
    %336 = vector.broadcast %cst_89 : f32 to vector<8x384xf32>
    %337 = arith.mulf %336, %335 : vector<8x384xf32>
    %338 = math.tanh %337 : vector<8x384xf32>
    %cst_90 = arith.constant 5.000000e-01 : f32
    %339 = vector.broadcast %cst_90 : f32 to vector<8x384xf32>
    %340 = arith.mulf %339, %338 : vector<8x384xf32>
    %cst_91 = arith.constant 5.000000e-01 : f32
    %341 = vector.broadcast %cst_91 : f32 to vector<8x384xf32>
    %342 = arith.addf %340, %341 : vector<8x384xf32>
    %343 = vector.extract_strided_slice %342 {offsets = [0, 0], sizes = [8, 128], strides = [1, 1]} : vector<8x384xf32> to vector<8x128xf32>
    %344 = vector.extract_strided_slice %342 {offsets = [0, 128], sizes = [8, 128], strides = [1, 1]} : vector<8x384xf32> to vector<8x128xf32>
    %345 = vector.extract_strided_slice %342 {offsets = [0, 256], sizes = [8, 128], strides = [1, 1]} : vector<8x384xf32> to vector<8x128xf32>
    %346 = vector.extract_strided_slice %334 {offsets = [0, 384], sizes = [8, 128], strides = [1, 1]} : vector<8x512xf32> to vector<8x128xf32>
    %347 = math.tanh %346 : vector<8x128xf32>
    %348 = arith.mulf %344, %302 : vector<8x128xf32>
    %349 = arith.mulf %343, %347 : vector<8x128xf32>
    %350 = arith.addf %348, %349 : vector<8x128xf32>
    %351 = math.tanh %350 : vector<8x128xf32>
    %352 = arith.mulf %345, %351 : vector<8x128xf32>
    %c7_i32 = arith.constant 7 : i32
    %c8_i32_92 = arith.constant 8 : i32
    %353 = arith.muli %c7_i32, %c8_i32_92 : i32
    %354 = tpu.assume_multiple %353, 8 : i32
    %355 = arith.index_cast %354 : i32 to index
    %c0_93 = arith.constant 0 : index
    %356 = vector.load %arg10[%355, %c0_93] : memref<64x512xf32, #tpu.memory_space<vmem>>, vector<8x512xf32>
    %357 = arith.truncf %329 : vector<8x128xf32> to vector<8x128xbf16>
    %cst_94 = arith.constant dense<0.000000e+00> : vector<8x512xf32>
    %358 = tpu.matmul %357, %10, %cst_94 {dimension_numbers = #tpu.dot_dimension_numbers<[1], [0], [0], [1], [0, 0, 1, 1], [], []>} : vector<8x128xbf16>, vector<128x512xbf16>, vector<8x512xf32> -> vector<8x512xf32>
    %359 = arith.addf %356, %358 : vector<8x512xf32>
    %360 = vector.extract_strided_slice %359 {offsets = [0, 0], sizes = [8, 384], strides = [1, 1]} : vector<8x512xf32> to vector<8x384xf32>
    %cst_95 = arith.constant 5.000000e-01 : f32
    %361 = vector.broadcast %cst_95 : f32 to vector<8x384xf32>
    %362 = arith.mulf %361, %360 : vector<8x384xf32>
    %363 = math.tanh %362 : vector<8x384xf32>
    %cst_96 = arith.constant 5.000000e-01 : f32
    %364 = vector.broadcast %cst_96 : f32 to vector<8x384xf32>
    %365 = arith.mulf %364, %363 : vector<8x384xf32>
    %cst_97 = arith.constant 5.000000e-01 : f32
    %366 = vector.broadcast %cst_97 : f32 to vector<8x384xf32>
    %367 = arith.addf %365, %366 : vector<8x384xf32>
    %368 = vector.extract_strided_slice %367 {offsets = [0, 0], sizes = [8, 128], strides = [1, 1]} : vector<8x384xf32> to vector<8x128xf32>
    %369 = vector.extract_strided_slice %367 {offsets = [0, 128], sizes = [8, 128], strides = [1, 1]} : vector<8x384xf32> to vector<8x128xf32>
    %370 = vector.extract_strided_slice %367 {offsets = [0, 256], sizes = [8, 128], strides = [1, 1]} : vector<8x384xf32> to vector<8x128xf32>
    %371 = vector.extract_strided_slice %359 {offsets = [0, 384], sizes = [8, 128], strides = [1, 1]} : vector<8x512xf32> to vector<8x128xf32>
    %372 = math.tanh %371 : vector<8x128xf32>
    %373 = arith.mulf %369, %327 : vector<8x128xf32>
    %374 = arith.mulf %368, %372 : vector<8x128xf32>
    %375 = arith.addf %373, %374 : vector<8x128xf32>
    %376 = math.tanh %375 : vector<8x128xf32>
    %377 = arith.mulf %370, %376 : vector<8x128xf32>
    %378 = arith.addf %377, %352 : vector<8x128xf32>
    %379 = arith.truncf %378 : vector<8x128xf32> to vector<8x128xbf16>
    %cst_98 = arith.constant dense<0.000000e+00> : vector<8x512xf32>
    %380 = tpu.matmul %379, %11, %cst_98 {dimension_numbers = #tpu.dot_dimension_numbers<[1], [0], [0], [1], [0, 0, 1, 1], [], []>} : vector<8x128xbf16>, vector<128x512xbf16>, vector<8x512xf32> -> vector<8x512xf32>
    %381 = vector.broadcast %12 : vector<1x512xf32> to vector<8x512xf32>
    %382 = arith.addf %380, %381 : vector<8x512xf32>
    %383 = vector.extract_strided_slice %382 {offsets = [0, 0], sizes = [8, 384], strides = [1, 1]} : vector<8x512xf32> to vector<8x384xf32>
    %cst_99 = arith.constant 5.000000e-01 : f32
    %384 = vector.broadcast %cst_99 : f32 to vector<8x384xf32>
    %385 = arith.mulf %384, %383 : vector<8x384xf32>
    %386 = math.tanh %385 : vector<8x384xf32>
    %cst_100 = arith.constant 5.000000e-01 : f32
    %387 = vector.broadcast %cst_100 : f32 to vector<8x384xf32>
    %388 = arith.mulf %387, %386 : vector<8x384xf32>
    %cst_101 = arith.constant 5.000000e-01 : f32
    %389 = vector.broadcast %cst_101 : f32 to vector<8x384xf32>
    %390 = arith.addf %388, %389 : vector<8x384xf32>
    %391 = vector.extract_strided_slice %390 {offsets = [0, 0], sizes = [8, 128], strides = [1, 1]} : vector<8x384xf32> to vector<8x128xf32>
    %392 = vector.extract_strided_slice %390 {offsets = [0, 128], sizes = [8, 128], strides = [1, 1]} : vector<8x384xf32> to vector<8x128xf32>
    %393 = vector.extract_strided_slice %390 {offsets = [0, 256], sizes = [8, 128], strides = [1, 1]} : vector<8x384xf32> to vector<8x128xf32>
    %394 = vector.extract_strided_slice %382 {offsets = [0, 384], sizes = [8, 128], strides = [1, 1]} : vector<8x512xf32> to vector<8x128xf32>
    %395 = math.tanh %394 : vector<8x128xf32>
    %396 = arith.mulf %392, %350 : vector<8x128xf32>
    %397 = arith.mulf %391, %395 : vector<8x128xf32>
    %398 = arith.addf %396, %397 : vector<8x128xf32>
    %399 = math.tanh %398 : vector<8x128xf32>
    %400 = arith.mulf %393, %399 : vector<8x128xf32>
    %c8_i32_102 = arith.constant 8 : i32
    %c0_103 = arith.constant 0 : index
    %c0_104 = arith.constant 0 : index
    %401 = vector.load %arg11[%c0_103, %c0_104] : memref<8x128xf32, #tpu.memory_space<vmem>>, vector<8x128xf32>
    tpu.vector_store %arg11[%c0_103, %c0_104], %377 {strides = array<i32>} : memref<8x128xf32, #tpu.memory_space<vmem>>, vector<8x128xf32>,
    %c0_105 = arith.constant 0 : index
    %c0_106 = arith.constant 0 : index
    %402 = vector.load %arg12[%c0_105, %c0_106] : memref<8x128xf32, #tpu.memory_space<vmem>>, vector<8x128xf32>
    tpu.vector_store %arg12[%c0_105, %c0_106], %375 {strides = array<i32>} : memref<8x128xf32, #tpu.memory_space<vmem>>, vector<8x128xf32>,
    %c0_107 = arith.constant 0 : index
    %c0_108 = arith.constant 0 : index
    %403 = vector.load %arg13[%c0_107, %c0_108] : memref<8x128xf32, #tpu.memory_space<vmem>>, vector<8x128xf32>
    tpu.vector_store %arg13[%c0_107, %c0_108], %400 {strides = array<i32>} : memref<8x128xf32, #tpu.memory_space<vmem>>, vector<8x128xf32>,
    %c0_109 = arith.constant 0 : index
    %c0_110 = arith.constant 0 : index
    %404 = vector.load %arg14[%c0_109, %c0_110] : memref<8x128xf32, #tpu.memory_space<vmem>>, vector<8x128xf32>
    tpu.vector_store %arg14[%c0_109, %c0_110], %398 {strides = array<i32>} : memref<8x128xf32, #tpu.memory_space<vmem>>, vector<8x128xf32>,
    %c0_i32_111 = arith.constant 0 : i32
    %405 = arith.cmpi eq, %arg0, %c0_i32_111 : i32
    %406 = arith.extui %405 : i1 to i32
    %c0_i32_112 = arith.constant 0 : i32
    %407 = arith.cmpi ne, %406, %c0_i32_112 : i32
    scf.if %407 {
      %408 = arith.truncf %400 : vector<8x128xf32> to vector<8x128xbf16>
      %c0_113 = arith.constant 0 : index
      %c0_114 = arith.constant 0 : index
      %409 = vector.load %arg7[%c0_113, %c0_114] : memref<128x128xbf16, #tpu.memory_space<vmem>>, vector<128x128xbf16>
      %cst_115 = arith.constant dense<0.000000e+00> : vector<8x128xf32>
      %410 = tpu.matmul %408, %409, %cst_115 {dimension_numbers = #tpu.dot_dimension_numbers<[1], [0], [0], [1], [0, 0, 1, 1], [], []>} : vector<8x128xbf16>, vector<128x128xbf16>, vector<8x128xf32> -> vector<8x128xf32>
      %c0_116 = arith.constant 0 : index
      %c0_117 = arith.constant 0 : index
      %411 = vector.load %arg8[%c0_116, %c0_117] : memref<1x128xf32, #tpu.memory_space<vmem>>, vector<1x128xf32>
      %412 = vector.broadcast %411 : vector<1x128xf32> to vector<8x128xf32>
      %413 = arith.addf %410, %412 : vector<8x128xf32>
      %c0_118 = arith.constant 0 : index
      %c0_119 = arith.constant 0 : index
      %414 = vector.load %arg9[%c0_118, %c0_119] : memref<8x128xf32, #tpu.memory_space<vmem>>, vector<8x128xf32>
      tpu.vector_store %arg9[%c0_118, %c0_119], %413 {strides = array<i32>} : memref<8x128xf32, #tpu.memory_space<vmem>>, vector<8x128xf32>,
    } else {
    }
    return
  }
  func.func @transform_0(%arg0: i32) -> (i32, i32) {
    %c0_i32 = arith.constant 0 : i32
    %c0_i32_0 = arith.constant 0 : i32
    return %arg0, %c0_i32 : i32, i32
  }
  func.func @transform_1(%arg0: i32) -> (i32, i32) {
    %c0_i32 = arith.constant 0 : i32
    %c0_i32_0 = arith.constant 0 : i32
    %c0_i32_1 = arith.constant 0 : i32
    return %c0_i32, %c0_i32_0 : i32, i32
  }
  func.func @transform_2(%arg0: i32) -> (i32, i32) {
    %c0_i32 = arith.constant 0 : i32
    %c0_i32_0 = arith.constant 0 : i32
    %c0_i32_1 = arith.constant 0 : i32
    return %c0_i32, %c0_i32_0 : i32, i32
  }
  func.func @transform_3(%arg0: i32) -> (i32, i32) {
    %c0_i32 = arith.constant 0 : i32
    %c0_i32_0 = arith.constant 0 : i32
    %c0_i32_1 = arith.constant 0 : i32
    return %c0_i32, %c0_i32_0 : i32, i32
  }
  func.func @transform_4(%arg0: i32) -> (i32, i32) {
    %c0_i32 = arith.constant 0 : i32
    %c0_i32_0 = arith.constant 0 : i32
    %c0_i32_1 = arith.constant 0 : i32
    return %c0_i32, %c0_i32_0 : i32, i32
  }
  func.func @transform_5(%arg0: i32) -> (i32, i32) {
    %c0_i32 = arith.constant 0 : i32
    %c0_i32_0 = arith.constant 0 : i32
    %c0_i32_1 = arith.constant 0 : i32
    return %c0_i32, %c0_i32_0 : i32, i32
  }
  func.func @transform_6(%arg0: i32) -> (i32, i32) {
    %c0_i32 = arith.constant 0 : i32
    %c0_i32_0 = arith.constant 0 : i32
    %c0_i32_1 = arith.constant 0 : i32
    return %c0_i32, %c0_i32_0 : i32, i32
  }
  func.func @transform_7(%arg0: i32) -> (i32, i32) {
    %c0_i32 = arith.constant 0 : i32
    %c0_i32_0 = arith.constant 0 : i32
    %c0_i32_1 = arith.constant 0 : i32
    return %c0_i32, %c0_i32_0 : i32, i32
  }
  func.func @transform_8(%arg0: i32) -> (i32, i32) {
    %c0_i32 = arith.constant 0 : i32
    %c0_i32_0 = arith.constant 0 : i32
    %c0_i32_1 = arith.constant 0 : i32
    return %c0_i32, %c0_i32_0 : i32, i32
  }
}

</mosaic_0001>

<llo_original>
// kernel: tpu_custom_call.1
$region0: #{tpu_custom_call.1}
  #allocation0 [shape = 'u32[]', space=smem, size = 0x4, offset = 0x4, fixed_abs, tag = 'smem constant byte address 0x4 - core index']
  #allocation1 [shape = 'u32[72,128]{1,0:T(1,128)}', space=vmem, size = 0x9000, scoped, tag = 'internal scratch']
  #allocation2 [shape = 'f32[64,512]{1,0:T(8,128)}', space=vmem, size = 0x20000, scoped, tag = 'scratch operand']
  #allocation3 [shape = 'f32[8,128]{1,0:T(8,128)}', space=vmem, size = 0x1000, scoped, tag = 'scratch operand']
  #allocation4 [shape = 'f32[8,128]{1,0:T(8,128)}', space=vmem, size = 0x1000, scoped, tag = 'scratch operand']
  #allocation5 [shape = 'f32[8,128]{1,0:T(8,128)}', space=vmem, size = 0x1000, scoped, tag = 'scratch operand']
  #allocation6 [shape = 'f32[8,128]{1,0:T(8,128)}', space=vmem, size = 0x1000, scoped, tag = 'scratch operand']
  %s0 = inlined_call_operand.vmem [shape: bf16[64,32], index: 0, kind: input, shape index: {}]
  %s1 = inlined_call_operand.hbm [shape: bf16[32,512], index: 1, kind: input, shape index: {}]
  %s2 = inlined_call_operand.hbm [shape: bf16[128,512], index: 2, kind: input, shape index: {}]
  %s3 = inlined_call_operand.vmem [shape: f32[1,512], index: 3, kind: input, shape index: {}]
  %s4 = inlined_call_operand.hbm [shape: bf16[128,512], index: 4, kind: input, shape index: {}]
  %s5 = inlined_call_operand.vmem [shape: f32[1,512], index: 5, kind: input, shape index: {}]
  %s6 = inlined_call_operand.hbm [shape: bf16[128,128], index: 6, kind: input, shape index: {}]
  %s7 = inlined_call_operand.vmem [shape: f32[1,128], index: 7, kind: input, shape index: {}]
  %s8 = inlined_call_operand.hbm [shape: f32[8,128], index: 8, kind: output, shape index: {}]
  %s9 = sld [smem:[#allocation0]]
  $region66: #{tpu_custom_call.1} parent=0
    _
  %s11 = ssub.s32 1, %s9
  %s12 = scalar_select 0, %s11, %s9
  $region1: #{tpu_custom_call.1} parent=0
    #allocation7 [shape = 'u8[32768]{0}', space=vmem, size = 0x8000, scoped, tag = 'input window, operand 1, single buffered']
    #allocation8 [shape = 's32[1]{0}', space=sflag, size = 0x4, scoped, tag = 'scoped memory for tpu_custom_call.1']
    #allocation9 [shape = 's32[1]{0}', space=sflag, size = 0x4, scoped, tag = 'scoped memory for tpu_custom_call.1']
    #allocation10 [shape = 'u8[131072]{0}', space=vmem, size = 0x20000, scoped, tag = 'input window, operand 2, single buffered']
    #allocation11 [shape = 's32[1]{0}', space=sflag, size = 0x4, scoped, tag = 'scoped memory for tpu_custom_call.1']
    #allocation12 [shape = 'u8[131072]{0}', space=vmem, size = 0x20000, scoped, tag = 'input window, operand 4, single buffered']
    #allocation13 [shape = 'u8[32768]{0}', space=vmem, size = 0x8000, scoped, tag = 'input window, operand 6, single buffered']
    #allocation14 [shape = 's32[1]{0}', space=sflag, size = 0x4, scoped, tag = 'scoped memory for tpu_custom_call.1']
    #allocation15 [shape = 'u8[4096]{0}', space=vmem, size = 0x1000, scoped, tag = 'output window, operand 0, single buffered']
    %13 = vsyncpa [#allocation8], 0
    %14 = vsyncpa [#allocation11], 0
    %15 = vsyncpa [#allocation14], 0
    %16 = vsyncpa [#allocation9], 0
    // Predicated region
    $region2: #{tpu_custom_call.1} parent=1 // pred_check
      _
    $region3: #{tpu_custom_call.1} parent=1 // pred_check_branch
      %18 = sbr.rel (0) target = $region5
    $region4: #{tpu_custom_call.1} parent=1 // pred_region
      _
    $region5: #{tpu_custom_call.1} parent=1 // pred_fallthru
      _
    // Predicated region
    $region6: #{tpu_custom_call.1} parent=1 // pred_check
      _
    $region7: #{tpu_custom_call.1} parent=1 // pred_check_branch
      %20 = sbr.rel (0) target = $region9
    $region8: #{tpu_custom_call.1} parent=1 // pred_region
      %22 = vsyncadd [#allocation8], 0
      %s23 = sshll.u32 %s1, 4
      %s24 = int_to_ptr.hbm [resolvable:$true] %s23
      %s25 = sshll.u32 [#allocation7], 4
      %s26 = int_to_ptr.vmem [resolvable:$true] %s25
      %31 = dma.hbm_to_vmem [thread:$0]  %s24, 1024, %s26, [#allocation8], 256, 256, 16
    $region9: #{tpu_custom_call.1} parent=1 // pred_fallthru
      _
    // Predicated region
    $region10: #{tpu_custom_call.1} parent=1 // pred_check
      _
    $region11: #{tpu_custom_call.1} parent=1 // pred_check_branch
      %33 = sbr.rel (0) target = $region13
    $region12: #{tpu_custom_call.1} parent=1 // pred_region
      %35 = vsyncadd [#allocation11], 0
      %s36 = sshll.u32 %s2, 4
      %s37 = int_to_ptr.hbm [resolvable:$true] %s36
      %s38 = sshll.u32 [#allocation10], 4
      %s39 = int_to_ptr.vmem [resolvable:$true] %s38
      %44 = dma.hbm_to_vmem [thread:$0]  %s37, 4096, %s39, [#allocation11], 256, 256, 16
    $region13: #{tpu_custom_call.1} parent=1 // pred_fallthru
      _
    // Predicated region
    $region14: #{tpu_custom_call.1} parent=1 // pred_check
      _
    $region15: #{tpu_custom_call.1} parent=1 // pred_check_branch
      %46 = sbr.rel (0) target = $region17
    $region16: #{tpu_custom_call.1} parent=1 // pred_region
      _
    $region17: #{tpu_custom_call.1} parent=1 // pred_fallthru
      _
    // Predicated region
    $region18: #{tpu_custom_call.1} parent=1 // pred_check
      _
    $region19: #{tpu_custom_call.1} parent=1 // pred_check_branch
      %48 = sbr.rel (0) target = $region21
    $region20: #{tpu_custom_call.1} parent=1 // pred_region
      %50 = vsyncadd [#allocation11], 0
      %s51 = sshll.u32 %s4, 4
      %s52 = int_to_ptr.hbm [resolvable:$true] %s51
      %s53 = sshll.u32 [#allocation12], 4
      %s54 = int_to_ptr.vmem [resolvable:$true] %s53
      %59 = dma.hbm_to_vmem [thread:$0]  %s52, 4096, %s54, [#allocation11], 256, 256, 16
    $region21: #{tpu_custom_call.1} parent=1 // pred_fallthru
      _
    // Predicated region
    $region22: #{tpu_custom_call.1} parent=1 // pred_check
      _
    $region23: #{tpu_custom_call.1} parent=1 // pred_check_branch
      %61 = sbr.rel (0) target = $region25
    $region24: #{tpu_custom_call.1} parent=1 // pred_region
      _
    $region25: #{tpu_custom_call.1} parent=1 // pred_fallthru
      _
    // Predicated region
    $region26: #{tpu_custom_call.1} parent=1 // pred_check
      _
    $region27: #{tpu_custom_call.1} parent=1 // pred_check_branch
      %63 = sbr.rel (0) target = $region29
    $region28: #{tpu_custom_call.1} parent=1 // pred_region
      %65 = vsyncadd [#allocation14], 0
      %s66 = sshll.u32 %s6, 4
      %s67 = int_to_ptr.hbm [resolvable:$true] %s66
      %s68 = sshll.u32 [#allocation13], 4
      %s69 = int_to_ptr.vmem [resolvable:$true] %s68
      %74 = dma.hbm_to_vmem [thread:$0]  %s67, 1024, %s69, [#allocation14], 64, 64, 4
    $region29: #{tpu_custom_call.1} parent=1 // pred_fallthru
      _
    // Predicated region
    $region30: #{tpu_custom_call.1} parent=1 // pred_check
      _
    $region31: #{tpu_custom_call.1} parent=1 // pred_check_branch
      %76 = sbr.rel (0) target = $region33
    $region32: #{tpu_custom_call.1} parent=1 // pred_region
      _
    $region33: #{tpu_custom_call.1} parent=1 // pred_fallthru
      _
    // Predicated region
    $region34: #{tpu_custom_call.1} parent=1 // pred_check
      _
    $region35: #{tpu_custom_call.1} parent=1 // pred_check_branch
      %78 = sbr.rel (0) target = $region37
    $region36: #{tpu_custom_call.1} parent=1 // pred_region
      %80 = dma.done [#allocation8], 1024
    $region37: #{tpu_custom_call.1} parent=1 // pred_fallthru
      _
    // Predicated region
    $region38: #{tpu_custom_call.1} parent=1 // pred_check
      _
    $region39: #{tpu_custom_call.1} parent=1 // pred_check_branch
      %82 = sbr.rel (0) target = $region41
    $region40: #{tpu_custom_call.1} parent=1 // pred_region
      %84 = dma.done [#allocation11], 4096
    $region41: #{tpu_custom_call.1} parent=1 // pred_fallthru
      _
    // Predicated region
    $region42: #{tpu_custom_call.1} parent=1 // pred_check
      _
    $region43: #{tpu_custom_call.1} parent=1 // pred_check_branch
      %86 = sbr.rel (0) target = $region45
    $region44: #{tpu_custom_call.1} parent=1 // pred_region
      %88 = dma.done [#allocation11], 4096
    $region45: #{tpu_custom_call.1} parent=1 // pred_fallthru
      _
    // Predicated region
    $region46: #{tpu_custom_call.1} parent=1 // pred_check
      _
    $region47: #{tpu_custom_call.1} parent=1 // pred_check_branch
      %90 = sbr.rel (0) target = $region49
    $region48: #{tpu_custom_call.1} parent=1 // pred_region
      %92 = dma.done [#allocation14], 1024
    $region49: #{tpu_custom_call.1} parent=1 // pred_fallthru
      _
    %p94 = scmp.eq.s32.totalorder 0, 0
    // Predicated region
    $region50: #{tpu_custom_call.1} parent=1 // pred_check
      %p95 = pneg %p94
    $region51: #{tpu_custom_call.1} parent=1 // pred_check_branch
      %97 = sbr.rel (%p95) target = $region53
    $region52: #{tpu_custom_call.1} parent=1 // pred_region
      %98 = vst [vmem:[#allocation3] sm:$0xff] 0.0
      %99 = vst [vmem:[#allocation4] sm:$0xff] 0.0
      %100 = vst [vmem:[#allocation5] sm:$0xff] 0.0
      %101 = vst [vmem:[#allocation6] sm:$0xff] 0.0
    $region53: #{tpu_custom_call.1} parent=1 // pred_fallthru
      _
    %v102 = vld [vmem:[%s0] sm:$0xf]
    %v103 = vld [vmem:[%s0 + $0x4] sm:$0xf]
    %v104 = vld [vmem:[%s0 + $0x8] sm:$0xf]
    %v105 = vld [vmem:[%s0 + $0xc] sm:$0xf]
    %v106 = vld [vmem:[%s0 + $0x10] sm:$0xf]
    %v107 = vld [vmem:[%s0 + $0x14] sm:$0xf]
    %v108 = vld [vmem:[%s0 + $0x18] sm:$0xf]
    %v109 = vld [vmem:[%s0 + $0x1c] sm:$0xf]
    %v110 = vld [vmem:[#allocation7] sm:$0xff]
    %v111 = vld [vmem:[#allocation7 + $0x8] sm:$0xff]
    %v112 = vld [vmem:[#allocation7 + $0x10] sm:$0xff]
    %v113 = vld [vmem:[#allocation7 + $0x18] sm:$0xff]
    %v114 = vld [vmem:[#allocation7 + $0x20] sm:$0xff]
    %v115 = vld [vmem:[#allocation7 + $0x28] sm:$0xff]
    %v116 = vld [vmem:[#allocation7 + $0x30] sm:$0xff]
    %v117 = vld [vmem:[#allocation7 + $0x38] sm:$0xff]
    %v118 = vld [vmem:[%s3] sm:$0xf]
    %v120 = vperm.slane %v118, 0
    %v121 = vperm.slane %v118, 1
    %v122 = vperm.slane %v118, 2
    %v123 = vperm.slane %v118, 3
    %v136 = vunpack.c.l.b16 %v102
    %v137 = vunpack.c.l.b16 %v103
    %v138 = vunpack.c.l.b16 %v104
    %v139 = vunpack.c.l.b16 %v105
    %v140 = vunpack.c.l.b16 %v106
    %v141 = vunpack.c.l.b16 %v107
    %v142 = vunpack.c.l.b16 %v108
    %v143 = vunpack.c.l.b16 %v109
    %v144 = vpack.c.b16 %v137, %v136
    %v145 = vpack.c.b16 %v139, %v138
    %v146 = vpack.c.b16 %v141, %v140
    %v147 = vpack.c.b16 %v143, %v142
    %v156 = vunpack.c.l.b16 %v110
    %v157 = vunpack.c.h.b16 %v110
    %v158 = vunpack.c.l.b16 %v111
    %v159 = vunpack.c.h.b16 %v111
    %v160 = vunpack.c.l.b16 %v112
    %v161 = vunpack.c.h.b16 %v112
    %v162 = vunpack.c.l.b16 %v113
    %v163 = vunpack.c.h.b16 %v113
    %v164 = vunpack.c.l.b16 %v114
    %v165 = vunpack.c.h.b16 %v114
    %v166 = vunpack.c.l.b16 %v115
    %v167 = vunpack.c.h.b16 %v115
    %v168 = vunpack.c.l.b16 %v116
    %v169 = vunpack.c.h.b16 %v116
    %v170 = vunpack.c.l.b16 %v117
    %v171 = vunpack.c.h.b16 %v117
    %v172 = vpack.c.b16 %v160, %v156
    %v173 = vpack.c.b16 %v161, %v157
    %v174 = vpack.c.b16 %v162, %v158
    %v175 = vpack.c.b16 %v163, %v159
    %v176 = vpack.c.b16 %v168, %v164
    %v177 = vpack.c.b16 %v169, %v165
    %v178 = vpack.c.b16 %v170, %v166
    %v179 = vpack.c.b16 %v171, %v167
    %vm188 = vcmask 261120
    %v190 = vsel %vm188, %v144, 0
    %v193 = vsel %vm188, %v145, 0
    %v196 = vsel %vm188, %v146, 0
    %v199 = vsel %vm188, %v147, 0
    %201 = vmatpush.bf16.msra.mxu0 0
    %202 = vmatpush.bf16.msra.mxu0 0
    %203 = vmatpush.bf16.msra.mxu0 0
    %204 = vmatpush.bf16.msra.mxu0 0
    %205 = vmatpush.bf16.msra.mxu0 0
    %206 = vmatpush.bf16.msra.mxu0 0
    %207 = vmatpush.bf16.msra.mxu0 %v176
    %208 = vmatpush.bf16.msra.mxu0 %v172
    %209 = vmatmul.bf16.gmra.mxu0 %v190
    %v210 = vpop.f32.mrf.mxu0
    %v211 = vadd.f32 %v120, %v210
    %v212 = vpop.f32.mrf.mxu0
    %v213 = vadd.f32 %v120, %v212
    %214 = vmatmul.bf16.gmra.mxu0 %v193
    %v215 = vpop.f32.mrf.mxu0
    %v216 = vadd.f32 %v120, %v215
    %v217 = vpop.f32.mrf.mxu0
    %v218 = vadd.f32 %v120, %v217
    %219 = vmatmul.bf16.gmra.mxu0 %v196
    %v220 = vpop.f32.mrf.mxu0
    %v221 = vadd.f32 %v120, %v220
    %v222 = vpop.f32.mrf.mxu0
    %v223 = vadd.f32 %v120, %v222
    %224 = vmatmul.bf16.gmra.mxu0 %v199
    %v225 = vpop.f32.mrf.mxu0
    %v226 = vadd.f32 %v120, %v225
    %v227 = vpop.f32.mrf.mxu0
    %v228 = vadd.f32 %v120, %v227
    %229 = vdwg.mxu0
    %230 = vmatpush.bf16.msra.mxu0 0
    %231 = vmatpush.bf16.msra.mxu0 0
    %232 = vmatpush.bf16.msra.mxu0 0
    %233 = vmatpush.bf16.msra.mxu0 0
    %234 = vmatpush.bf16.msra.mxu0 0
    %235 = vmatpush.bf16.msra.mxu0 0
    %236 = vmatpush.bf16.msra.mxu0 %v177
    %237 = vmatpush.bf16.msra.mxu0 %v173
    %238 = vmatmul.bf16.gmra.mxu0 %v190
    %v239 = vpop.f32.mrf.mxu0
    %v240 = vadd.f32 %v121, %v239
    %v241 = vpop.f32.mrf.mxu0
    %v242 = vadd.f32 %v121, %v241
    %243 = vmatmul.bf16.gmra.mxu0 %v193
    %v244 = vpop.f32.mrf.mxu0
    %v245 = vadd.f32 %v121, %v244
    %v246 = vpop.f32.mrf.mxu0
    %v247 = vadd.f32 %v121, %v246
    %248 = vmatmul.bf16.gmra.mxu0 %v196
    %v249 = vpop.f32.mrf.mxu0
    %v250 = vadd.f32 %v121, %v249
    %v251 = vpop.f32.mrf.mxu0
    %v252 = vadd.f32 %v121, %v251
    %253 = vmatmul.bf16.gmra.mxu0 %v199
    %v254 = vpop.f32.mrf.mxu0
    %v255 = vadd.f32 %v121, %v254
    %v256 = vpop.f32.mrf.mxu0
    %v257 = vadd.f32 %v121, %v256
    %258 = vdwg.mxu0
    %259 = vmatpush.bf16.msra.mxu0 0
    %260 = vmatpush.bf16.msra.mxu0 0
    %261 = vmatpush.bf16.msra.mxu0 0
    %262 = vmatpush.bf16.msra.mxu0 0
    %263 = vmatpush.bf16.msra.mxu0 0
    %264 = vmatpush.bf16.msra.mxu0 0
    %265 = vmatpush.bf16.msra.mxu0 %v178
    %266 = vmatpush.bf16.msra.mxu0 %v174
    %267 = vmatmul.bf16.gmra.mxu0 %v190
    %v268 = vpop.f32.mrf.mxu0
    %v269 = vadd.f32 %v122, %v268
    %v270 = vpop.f32.mrf.mxu0
    %v271 = vadd.f32 %v122, %v270
    %272 = vmatmul.bf16.gmra.mxu0 %v193
    %v273 = vpop.f32.mrf.mxu0
    %v274 = vadd.f32 %v122, %v273
    %v275 = vpop.f32.mrf.mxu0
    %v276 = vadd.f32 %v122, %v275
    %277 = vmatmul.bf16.gmra.mxu0 %v196
    %v278 = vpop.f32.mrf.mxu0
    %v279 = vadd.f32 %v122, %v278
    %v280 = vpop.f32.mrf.mxu0
    %v281 = vadd.f32 %v122, %v280
    %282 = vmatmul.bf16.gmra.mxu0 %v199
    %v283 = vpop.f32.mrf.mxu0
    %v284 = vadd.f32 %v122, %v283
    %v285 = vpop.f32.mrf.mxu0
    %v286 = vadd.f32 %v122, %v285
    %287 = vdwg.mxu0
    %288 = vmatpush.bf16.msra.mxu0 0
    %289 = vmatpush.bf16.msra.mxu0 0
    %290 = vmatpush.bf16.msra.mxu0 0
    %291 = vmatpush.bf16.msra.mxu0 0
    %292 = vmatpush.bf16.msra.mxu0 0
    %293 = vmatpush.bf16.msra.mxu0 0
    %294 = vmatpush.bf16.msra.mxu0 %v179
    %295 = vmatpush.bf16.msra.mxu0 %v175
    %296 = vmatmul.bf16.gmra.mxu0 %v190
    %v297 = vpop.f32.mrf.mxu0
    %v298 = vadd.f32 %v123, %v297
    %v299 = vpop.f32.mrf.mxu0
    %v300 = vadd.f32 %v123, %v299
    %301 = vmatmul.bf16.gmra.mxu0 %v193
    %v302 = vpop.f32.mrf.mxu0
    %v303 = vadd.f32 %v123, %v302
    %v304 = vpop.f32.mrf.mxu0
    %v305 = vadd.f32 %v123, %v304
    %306 = vmatmul.bf16.gmra.mxu0 %v196
    %v307 = vpop.f32.mrf.mxu0
    %v308 = vadd.f32 %v123, %v307
    %v309 = vpop.f32.mrf.mxu0
    %v310 = vadd.f32 %v123, %v309
    %311 = vmatmul.bf16.gmra.mxu0 %v199
    %v312 = vpop.f32.mrf.mxu0
    %v313 = vadd.f32 %v123, %v312
    %v314 = vpop.f32.mrf.mxu0
    %v315 = vadd.f32 %v123, %v314
    %316 = vdwg.mxu0
    %317 = vst [vmem:[#allocation2] sm:$0xff] %v211
    %318 = vst [vmem:[#allocation2 + $0x8] sm:$0xff] %v240
    %319 = vst [vmem:[#allocation2 + $0x10] sm:$0xff] %v269
    %320 = vst [vmem:[#allocation2 + $0x18] sm:$0xff] %v298
    %321 = vst [vmem:[#allocation2 + $0x20] sm:$0xff] %v213
    %322 = vst [vmem:[#allocation2 + $0x28] sm:$0xff] %v242
    %323 = vst [vmem:[#allocation2 + $0x30] sm:$0xff] %v271
    %324 = vst [vmem:[#allocation2 + $0x38] sm:$0xff] %v300
    %325 = vst [vmem:[#allocation2 + $0x40] sm:$0xff] %v216
    %326 = vst [vmem:[#allocation2 + $0x48] sm:$0xff] %v245
    %327 = vst [vmem:[#allocation2 + $0x50] sm:$0xff] %v274
    %328 = vst [vmem:[#allocation2 + $0x58] sm:$0xff] %v303
    %329 = vst [vmem:[#allocation2 + $0x60] sm:$0xff] %v218
    %330 = vst [vmem:[#allocation2 + $0x68] sm:$0xff] %v247
    %331 = vst [vmem:[#allocation2 + $0x70] sm:$0xff] %v276
    %332 = vst [vmem:[#allocation2 + $0x78] sm:$0xff] %v305
    %333 = vst [vmem:[#allocation2 + $0x80] sm:$0xff] %v221
    %334 = vst [vmem:[#allocation2 + $0x88] sm:$0xff] %v250
    %335 = vst [vmem:[#allocation2 + $0x90] sm:$0xff] %v279
    %336 = vst [vmem:[#allocation2 + $0x98] sm:$0xff] %v308
    %337 = vst [vmem:[#allocation2 + $0xa0] sm:$0xff] %v223
    %338 = vst [vmem:[#allocation2 + $0xa8] sm:$0xff] %v252
    %339 = vst [vmem:[#allocation2 + $0xb0] sm:$0xff] %v281
    %340 = vst [vmem:[#allocation2 + $0xb8] sm:$0xff] %v310
    %341 = vst [vmem:[#allocation2 + $0xc0] sm:$0xff] %v226
    %342 = vst [vmem:[#allocation2 + $0xc8] sm:$0xff] %v255
    %343 = vst [vmem:[#allocation2 + $0xd0] sm:$0xff] %v284
    %344 = vst [vmem:[#allocation2 + $0xd8] sm:$0xff] %v313
    %345 = vst [vmem:[#allocation2 + $0xe0] sm:$0xff] %v228
    %346 = vst [vmem:[#allocation2 + $0xe8] sm:$0xff] %v257
    %347 = vst [vmem:[#allocation2 + $0xf0] sm:$0xff] %v286
    %348 = vst [vmem:[#allocation2 + $0xf8] sm:$0xff] %v315
    %v349 = vld [vmem:[#allocation10] sm:$0xff]
    %v350 = vld [vmem:[#allocation10 + $0x8] sm:$0xff]
    %v351 = vld [vmem:[#allocation10 + $0x10] sm:$0xff]
    %v352 = vld [vmem:[#allocation10 + $0x18] sm:$0xff]
    %v353 = vld [vmem:[#allocation10 + $0x20] sm:$0xff]
    %v354 = vld [vmem:[#allocation10 + $0x28] sm:$0xff]
    %v355 = vld [vmem:[#allocation10 + $0x30] sm:$0xff]
    %v356 = vld [vmem:[#allocation10 + $0x38] sm:$0xff]
    %v357 = vld [vmem:[#allocation10 + $0x40] sm:$0xff]
    %v358 = vld [vmem:[#allocation10 + $0x48] sm:$0xff]
    %v359 = vld [vmem:[#allocation10 + $0x50] sm:$0xff]
    %v360 = vld [vmem:[#allocation10 + $0x58] sm:$0xff]
    %v361 = vld [vmem:[#allocation10 + $0x60] sm:$0xff]
    %v362 = vld [vmem:[#allocation10 + $0x68] sm:$0xff]
    %v363 = vld [vmem:[#allocation10 + $0x70] sm:$0xff]
    %v364 = vld [vmem:[#allocation10 + $0x78] sm:$0xff]
    %v365 = vld [vmem:[#allocation10 + $0x80] sm:$0xff]
    %v366 = vld [vmem:[#allocation10 + $0x88] sm:$0xff]
    %v367 = vld [vmem:[#allocation10 + $0x90] sm:$0xff]
    %v368 = vld [vmem:[#allocation10 + $0x98] sm:$0xff]
    %v369 = vld [vmem:[#allocation10 + $0xa0] sm:$0xff]
    %v370 = vld [vmem:[#allocation10 + $0xa8] sm:$0xff]
    %v371 = vld [vmem:[#allocation10 + $0xb0] sm:$0xff]
    %v372 = vld [vmem:[#allocation10 + $0xb8] sm:$0xff]
    %v373 = vld [vmem:[#allocation10 + $0xc0] sm:$0xff]
    %v374 = vld [vmem:[#allocation10 + $0xc8] sm:$0xff]
    %v375 = vld [vmem:[#allocation10 + $0xd0] sm:$0xff]
    %v376 = vld [vmem:[#allocation10 + $0xd8] sm:$0xff]
    %v377 = vld [vmem:[#allocation10 + $0xe0] sm:$0xff]
    %v378 = vld [vmem:[#allocation10 + $0xe8] sm:$0xff]
    %v379 = vld [vmem:[#allocation10 + $0xf0] sm:$0xff]
    %v380 = vld [vmem:[#allocation10 + $0xf8] sm:$0xff]
    %v381 = vld [vmem:[#allocation12] sm:$0xff]
    %v382 = vld [vmem:[#allocation12 + $0x8] sm:$0xff]
    %v383 = vld [vmem:[#allocation12 + $0x10] sm:$0xff]
    %v384 = vld [vmem:[#allocation12 + $0x18] sm:$0xff]
    %v385 = vld [vmem:[#allocation12 + $0x20] sm:$0xff]
    %v386 = vld [vmem:[#allocation12 + $0x28] sm:$0xff]
    %v387 = vld [vmem:[#allocation12 + $0x30] sm:$0xff]
    %v388 = vld [vmem:[#allocation12 + $0x38] sm:$0xff]
    %v389 = vld [vmem:[#allocation12 + $0x40] sm:$0xff]
    %v390 = vld [vmem:[#allocation12 + $0x48] sm:$0xff]
    %v391 = vld [vmem:[#allocation12 + $0x50] sm:$0xff]
    %v392 = vld [vmem:[#allocation12 + $0x58] sm:$0xff]
    %v393 = vld [vmem:[#allocation12 + $0x60] sm:$0xff]
    %v394 = vld [vmem:[#allocation12 + $0x68] sm:$0xff]
    %v395 = vld [vmem:[#allocation12 + $0x70] sm:$0xff]
    %v396 = vld [vmem:[#allocation12 + $0x78] sm:$0xff]
    %v397 = vld [vmem:[#allocation12 + $0x80] sm:$0xff]
    %v398 = vld [vmem:[#allocation12 + $0x88] sm:$0xff]
    %v399 = vld [vmem:[#allocation12 + $0x90] sm:$0xff]
    %v400 = vld [vmem:[#allocation12 + $0x98] sm:$0xff]
    %v401 = vld [vmem:[#allocation12 + $0xa0] sm:$0xff]
    %v402 = vld [vmem:[#allocation12 + $0xa8] sm:$0xff]
    %v403 = vld [vmem:[#allocation12 + $0xb0] sm:$0xff]
    %v404 = vld [vmem:[#allocation12 + $0xb8] sm:$0xff]
    %v405 = vld [vmem:[#allocation12 + $0xc0] sm:$0xff]
    %v406 = vld [vmem:[#allocation12 + $0xc8] sm:$0xff]
    %v407 = vld [vmem:[#allocation12 + $0xd0] sm:$0xff]
    %v408 = vld [vmem:[#allocation12 + $0xd8] sm:$0xff]
    %v409 = vld [vmem:[#allocation12 + $0xe0] sm:$0xff]
    %v410 = vld [vmem:[#allocation12 + $0xe8] sm:$0xff]
    %v411 = vld [vmem:[#allocation12 + $0xf0] sm:$0xff]
    %v412 = vld [vmem:[#allocation12 + $0xf8] sm:$0xff]
    %v413 = vld [vmem:[%s5] sm:$0xf]
    %v414 = vld [vmem:[#allocation3] sm:$0xff]
    %v415 = vld [vmem:[#allocation4] sm:$0xff]
    %v416 = vld [vmem:[#allocation5] sm:$0xff]
    %v417 = vld [vmem:[#allocation6] sm:$0xff]
    %s418 = smul.u32 0, 4
    %s419 = smul.addr %s418, 8
    %s420 = scalar_lea.vmem [#allocation2], %s419
    %v421 = vld [vmem:[%s420] sm:$0xff]
    %v422 = vld [vmem:[%s420 + $0x8] sm:$0xff]
    %v423 = vld [vmem:[%s420 + $0x10] sm:$0xff]
    %v424 = vld [vmem:[%s420 + $0x18] sm:$0xff]
    %v425 = vpack.c.bf16 %v414, %v414
    %v458 = vunpack.c.l.b16 %v349
    %v459 = vunpack.c.h.b16 %v349
    %v460 = vunpack.c.l.b16 %v350
    %v461 = vunpack.c.h.b16 %v350
    %v462 = vunpack.c.l.b16 %v351
    %v463 = vunpack.c.h.b16 %v351
    %v464 = vunpack.c.l.b16 %v352
    %v465 = vunpack.c.h.b16 %v352
    %v466 = vunpack.c.l.b16 %v353
    %v467 = vunpack.c.h.b16 %v353
    %v468 = vunpack.c.l.b16 %v354
    %v469 = vunpack.c.h.b16 %v354
    %v470 = vunpack.c.l.b16 %v355
    %v471 = vunpack.c.h.b16 %v355
    %v472 = vunpack.c.l.b16 %v356
    %v473 = vunpack.c.h.b16 %v356
    %v474 = vunpack.c.l.b16 %v357
    %v475 = vunpack.c.h.b16 %v357
    %v476 = vunpack.c.l.b16 %v358
    %v477 = vunpack.c.h.b16 %v358
    %v478 = vunpack.c.l.b16 %v359
    %v479 = vunpack.c.h.b16 %v359
    %v480 = vunpack.c.l.b16 %v360
    %v481 = vunpack.c.h.b16 %v360
    %v482 = vunpack.c.l.b16 %v361
    %v483 = vunpack.c.h.b16 %v361
    %v484 = vunpack.c.l.b16 %v362
    %v485 = vunpack.c.h.b16 %v362
    %v486 = vunpack.c.l.b16 %v363
    %v487 = vunpack.c.h.b16 %v363
    %v488 = vunpack.c.l.b16 %v364
    %v489 = vunpack.c.h.b16 %v364
    %v490 = vunpack.c.l.b16 %v365
    %v491 = vunpack.c.h.b16 %v365
    %v492 = vunpack.c.l.b16 %v366
    %v493 = vunpack.c.h.b16 %v366
    %v494 = vunpack.c.l.b16 %v367
    %v495 = vunpack.c.h.b16 %v367
    %v496 = vunpack.c.l.b16 %v368
    %v497 = vunpack.c.h.b16 %v368
    %v498 = vunpack.c.l.b16 %v369
    %v499 = vunpack.c.h.b16 %v369
    %v500 = vunpack.c.l.b16 %v370
    %v501 = vunpack.c.h.b16 %v370
    %v502 = vunpack.c.l.b16 %v371
    %v503 = vunpack.c.h.b16 %v371
    %v504 = vunpack.c.l.b16 %v372
    %v505 = vunpack.c.h.b16 %v372
    %v506 = vunpack.c.l.b16 %v373
    %v507 = vunpack.c.h.b16 %v373
    %v508 = vunpack.c.l.b16 %v374
    %v509 = vunpack.c.h.b16 %v374
    %v510 = vunpack.c.l.b16 %v375
    %v511 = vunpack.c.h.b16 %v375
    %v512 = vunpack.c.l.b16 %v376
    %v513 = vunpack.c.h.b16 %v376
    %v514 = vunpack.c.l.b16 %v377
    %v515 = vunpack.c.h.b16 %v377
    %v516 = vunpack.c.l.b16 %v378
    %v517 = vunpack.c.h.b16 %v378
    %v518 = vunpack.c.l.b16 %v379
    %v519 = vunpack.c.h.b16 %v379
    %v520 = vunpack.c.l.b16 %v380
    %v521 = vunpack.c.h.b16 %v380
    %v522 = vpack.c.b16 %v462, %v458
    %v523 = vpack.c.b16 %v463, %v459
    %v524 = vpack.c.b16 %v464, %v460
    %v525 = vpack.c.b16 %v465, %v461
    %v526 = vpack.c.b16 %v470, %v466
    %v527 = vpack.c.b16 %v471, %v467
    %v528 = vpack.c.b16 %v472, %v468
    %v529 = vpack.c.b16 %v473, %v469
    %v530 = vpack.c.b16 %v478, %v474
    %v531 = vpack.c.b16 %v479, %v475
    %v532 = vpack.c.b16 %v480, %v476
    %v533 = vpack.c.b16 %v481, %v477
    %v534 = vpack.c.b16 %v486, %v482
    %v535 = vpack.c.b16 %v487, %v483
    %v536 = vpack.c.b16 %v488, %v484
    %v537 = vpack.c.b16 %v489, %v485
    %v538 = vpack.c.b16 %v494, %v490
    %v539 = vpack.c.b16 %v495, %v491
    %v540 = vpack.c.b16 %v496, %v492
    %v541 = vpack.c.b16 %v497, %v493
    %v542 = vpack.c.b16 %v502, %v498
    %v543 = vpack.c.b16 %v503, %v499
    %v544 = vpack.c.b16 %v504, %v500
    %v545 = vpack.c.b16 %v505, %v501
    %v546 = vpack.c.b16 %v510, %v506
    %v547 = vpack.c.b16 %v511, %v507
    %v548 = vpack.c.b16 %v512, %v508
    %v549 = vpack.c.b16 %v513, %v509
    %v550 = vpack.c.b16 %v518, %v514
    %v551 = vpack.c.b16 %v519, %v515
    %v552 = vpack.c.b16 %v520, %v516
    %v553 = vpack.c.b16 %v521, %v517
    %586 = vmatpush.bf16.msra.mxu0 %v550
    %587 = vmatpush.bf16.msra.mxu0 %v546
    %588 = vmatpush.bf16.msra.mxu0 %v542
    %589 = vmatpush.bf16.msra.mxu0 %v538
    %590 = vmatpush.bf16.msra.mxu0 %v534
    %591 = vmatpush.bf16.msra.mxu0 %v530
    %592 = vmatpush.bf16.msra.mxu0 %v526
    %593 = vmatpush.bf16.msra.mxu0 %v522
    %594 = vmatmul.bf16.gmra.mxu0 %v425
    %v595 = vpop.f32.mrf.mxu0
    %v596 = vadd.f32 0.0, %v595
    %v597 = vpop.f32.mrf.mxu0
    %598 = vdwg.mxu0
    %599 = vmatpush.bf16.msra.mxu0 %v551
    %600 = vmatpush.bf16.msra.mxu0 %v547
    %601 = vmatpush.bf16.msra.mxu0 %v543
    %602 = vmatpush.bf16.msra.mxu0 %v539
    %603 = vmatpush.bf16.msra.mxu0 %v535
    %604 = vmatpush.bf16.msra.mxu0 %v531
    %605 = vmatpush.bf16.msra.mxu0 %v527
    %606 = vmatpush.bf16.msra.mxu0 %v523
    %607 = vmatmul.bf16.gmra.mxu0 %v425
    %v608 = vpop.f32.mrf.mxu0
    %v609 = vadd.f32 0.0, %v608
    %v610 = vpop.f32.mrf.mxu0
    %611 = vdwg.mxu0
    %612 = vmatpush.bf16.msra.mxu0 %v552
    %613 = vmatpush.bf16.msra.mxu0 %v548
    %614 = vmatpush.bf16.msra.mxu0 %v544
    %615 = vmatpush.bf16.msra.mxu0 %v540
    %616 = vmatpush.bf16.msra.mxu0 %v536
    %617 = vmatpush.bf16.msra.mxu0 %v532
    %618 = vmatpush.bf16.msra.mxu0 %v528
    %619 = vmatpush.bf16.msra.mxu0 %v524
    %620 = vmatmul.bf16.gmra.mxu0 %v425
    %v621 = vpop.f32.mrf.mxu0
    %v622 = vadd.f32 0.0, %v621
    %v623 = vpop.f32.mrf.mxu0
    %624 = vdwg.mxu0
    %625 = vmatpush.bf16.msra.mxu0 %v553
    %626 = vmatpush.bf16.msra.mxu0 %v549
    %627 = vmatpush.bf16.msra.mxu0 %v545
    %628 = vmatpush.bf16.msra.mxu0 %v541
    %629 = vmatpush.bf16.msra.mxu0 %v537
    %630 = vmatpush.bf16.msra.mxu0 %v533
    %631 = vmatpush.bf16.msra.mxu0 %v529
    %632 = vmatpush.bf16.msra.mxu0 %v525
    %633 = vmatmul.bf16.gmra.mxu0 %v425
    %v634 = vpop.f32.mrf.mxu0
    %v635 = vadd.f32 0.0, %v634
    %v636 = vpop.f32.mrf.mxu0
    %637 = vdwg.mxu0
    %v638 = vadd.f32 %v421, %v596
    %v639 = vadd.f32 %v422, %v609
    %v640 = vadd.f32 %v423, %v622
    %v641 = vadd.f32 %v424, %v635
    %v642 = vmul.f32 %v638, 0.5
    %v643 = vmul.f32 %v639, 0.5
    %v644 = vmul.f32 %v640, 0.5
    %v645 = vtanh.pop %v642
    %v646 = vtanh.pop %v643
    %v647 = vtanh.pop %v644
    %v648 = vmul.f32 %v645, 0.5
    %v649 = vmul.f32 %v646, 0.5
    %v650 = vmul.f32 %v647, 0.5
    %v651 = vadd.f32 %v648, 0.5
    %v652 = vadd.f32 %v649, 0.5
    %v653 = vadd.f32 %v650, 0.5
    %v654 = vtanh.pop %v641
    %v655 = vmul.f32 %v652, %v415
    %v656 = vmul.f32 %v651, %v654
    %v657 = vadd.f32 %v655, %v656
    %v658 = vtanh.pop %v657
    %v659 = vmul.f32 %v653, %v658
    %v660 = vadd.f32 %v659, %v416
    %v661 = vpack.c.bf16 %v660, %v660
    %v663 = vperm.slane %v413, 0
    %v664 = vperm.slane %v413, 1
    %v665 = vperm.slane %v413, 2
    %v666 = vperm.slane %v413, 3
    %v703 = vunpack.c.l.b16 %v381
    %v704 = vunpack.c.h.b16 %v381
    %v705 = vunpack.c.l.b16 %v382
    %v706 = vunpack.c.h.b16 %v382
    %v707 = vunpack.c.l.b16 %v383
    %v708 = vunpack.c.h.b16 %v383
    %v709 = vunpack.c.l.b16 %v384
    %v710 = vunpack.c.h.b16 %v384
    %v711 = vunpack.c.l.b16 %v385
    %v712 = vunpack.c.h.b16 %v385
    %v713 = vunpack.c.l.b16 %v386
    %v714 = vunpack.c.h.b16 %v386
    %v715 = vunpack.c.l.b16 %v387
    %v716 = vunpack.c.h.b16 %v387
    %v717 = vunpack.c.l.b16 %v388
    %v718 = vunpack.c.h.b16 %v388
    %v719 = vunpack.c.l.b16 %v389
    %v720 = vunpack.c.h.b16 %v389
    %v721 = vunpack.c.l.b16 %v390
    %v722 = vunpack.c.h.b16 %v390
    %v723 = vunpack.c.l.b16 %v391
    %v724 = vunpack.c.h.b16 %v391
    %v725 = vunpack.c.l.b16 %v392
    %v726 = vunpack.c.h.b16 %v392
    %v727 = vunpack.c.l.b16 %v393
    %v728 = vunpack.c.h.b16 %v393
    %v729 = vunpack.c.l.b16 %v394
    %v730 = vunpack.c.h.b16 %v394
    %v731 = vunpack.c.l.b16 %v395
    %v732 = vunpack.c.h.b16 %v395
    %v733 = vunpack.c.l.b16 %v396
    %v734 = vunpack.c.h.b16 %v396
    %v735 = vunpack.c.l.b16 %v397
    %v736 = vunpack.c.h.b16 %v397
    %v737 = vunpack.c.l.b16 %v398
    %v738 = vunpack.c.h.b16 %v398
    %v739 = vunpack.c.l.b16 %v399
    %v740 = vunpack.c.h.b16 %v399
    %v741 = vunpack.c.l.b16 %v400
    %v742 = vunpack.c.h.b16 %v400
    %v743 = vunpack.c.l.b16 %v401
    %v744 = vunpack.c.h.b16 %v401
    %v745 = vunpack.c.l.b16 %v402
    %v746 = vunpack.c.h.b16 %v402
    %v747 = vunpack.c.l.b16 %v403
    %v748 = vunpack.c.h.b16 %v403
    %v749 = vunpack.c.l.b16 %v404
    %v750 = vunpack.c.h.b16 %v404
    %v751 = vunpack.c.l.b16 %v405
    %v752 = vunpack.c.h.b16 %v405
    %v753 = vunpack.c.l.b16 %v406
    %v754 = vunpack.c.h.b16 %v406
    %v755 = vunpack.c.l.b16 %v407
    %v756 = vunpack.c.h.b16 %v407
    %v757 = vunpack.c.l.b16 %v408
    %v758 = vunpack.c.h.b16 %v408
    %v759 = vunpack.c.l.b16 %v409
    %v760 = vunpack.c.h.b16 %v409
    %v761 = vunpack.c.l.b16 %v410
    %v762 = vunpack.c.h.b16 %v410
    %v763 = vunpack.c.l.b16 %v411
    %v764 = vunpack.c.h.b16 %v411
    %v765 = vunpack.c.l.b16 %v412
    %v766 = vunpack.c.h.b16 %v412
    %v767 = vpack.c.b16 %v707, %v703
    %v768 = vpack.c.b16 %v708, %v704
    %v769 = vpack.c.b16 %v709, %v705
    %v770 = vpack.c.b16 %v710, %v706
    %v771 = vpack.c.b16 %v715, %v711
    %v772 = vpack.c.b16 %v716, %v712
    %v773 = vpack.c.b16 %v717, %v713
    %v774 = vpack.c.b16 %v718, %v714
    %v775 = vpack.c.b16 %v723, %v719
    %v776 = vpack.c.b16 %v724, %v720
    %v777 = vpack.c.b16 %v725, %v721
    %v778 = vpack.c.b16 %v726, %v722
    %v779 = vpack.c.b16 %v731, %v727
    %v780 = vpack.c.b16 %v732, %v728
    %v781 = vpack.c.b16 %v733, %v729
    %v782 = vpack.c.b16 %v734, %v730
    %v783 = vpack.c.b16 %v739, %v735
    %v784 = vpack.c.b16 %v740, %v736
    %v785 = vpack.c.b16 %v741, %v737
    %v786 = vpack.c.b16 %v742, %v738
    %v787 = vpack.c.b16 %v747, %v743
    %v788 = vpack.c.b16 %v748, %v744
    %v789 = vpack.c.b16 %v749, %v745
    %v790 = vpack.c.b16 %v750, %v746
    %v791 = vpack.c.b16 %v755, %v751
    %v792 = vpack.c.b16 %v756, %v752
    %v793 = vpack.c.b16 %v757, %v753
    %v794 = vpack.c.b16 %v758, %v754
    %v795 = vpack.c.b16 %v763, %v759
    %v796 = vpack.c.b16 %v764, %v760
    %v797 = vpack.c.b16 %v765, %v761
    %v798 = vpack.c.b16 %v766, %v762
    %831 = vmatpush.bf16.msra.mxu0 %v795
    %832 = vmatpush.bf16.msra.mxu0 %v791
    %833 = vmatpush.bf16.msra.mxu0 %v787
    %834 = vmatpush.bf16.msra.mxu0 %v783
    %835 = vmatpush.bf16.msra.mxu0 %v779
    %836 = vmatpush.bf16.msra.mxu0 %v775
    %837 = vmatpush.bf16.msra.mxu0 %v771
    %838 = vmatpush.bf16.msra.mxu0 %v767
    %839 = vmatmul.bf16.gmra.mxu0 %v661
    %v840 = vpop.f32.mrf.mxu0
    %v841 = vadd.f32 %v663, %v840
    %v842 = vpop.f32.mrf.mxu0
    %843 = vdwg.mxu0
    %844 = vmatpush.bf16.msra.mxu0 %v796
    %845 = vmatpush.bf16.msra.mxu0 %v792
    %846 = vmatpush.bf16.msra.mxu0 %v788
    %847 = vmatpush.bf16.msra.mxu0 %v784
    %848 = vmatpush.bf16.msra.mxu0 %v780
    %849 = vmatpush.bf16.msra.mxu0 %v776
    %850 = vmatpush.bf16.msra.mxu0 %v772
    %851 = vmatpush.bf16.msra.mxu0 %v768
    %852 = vmatmul.bf16.gmra.mxu0 %v661
    %v853 = vpop.f32.mrf.mxu0
    %v854 = vadd.f32 %v664, %v853
    %v855 = vpop.f32.mrf.mxu0
    %856 = vdwg.mxu0
    %857 = vmatpush.bf16.msra.mxu0 %v797
    %858 = vmatpush.bf16.msra.mxu0 %v793
    %859 = vmatpush.bf16.msra.mxu0 %v789
    %860 = vmatpush.bf16.msra.mxu0 %v785
    %861 = vmatpush.bf16.msra.mxu0 %v781
    %862 = vmatpush.bf16.msra.mxu0 %v777
    %863 = vmatpush.bf16.msra.mxu0 %v773
    %864 = vmatpush.bf16.msra.mxu0 %v769
    %865 = vmatmul.bf16.gmra.mxu0 %v661
    %v866 = vpop.f32.mrf.mxu0
    %v867 = vadd.f32 %v665, %v866
    %v868 = vpop.f32.mrf.mxu0
    %869 = vdwg.mxu0
    %870 = vmatpush.bf16.msra.mxu0 %v798
    %871 = vmatpush.bf16.msra.mxu0 %v794
    %872 = vmatpush.bf16.msra.mxu0 %v790
    %873 = vmatpush.bf16.msra.mxu0 %v786
    %874 = vmatpush.bf16.msra.mxu0 %v782
    %875 = vmatpush.bf16.msra.mxu0 %v778
    %876 = vmatpush.bf16.msra.mxu0 %v774
    %877 = vmatpush.bf16.msra.mxu0 %v770
    %878 = vmatmul.bf16.gmra.mxu0 %v661
    %v879 = vpop.f32.mrf.mxu0
    %v880 = vadd.f32 %v666, %v879
    %v881 = vpop.f32.mrf.mxu0
    %882 = vdwg.mxu0
    %v883 = vmul.f32 %v841, 0.5
    %v884 = vmul.f32 %v854, 0.5
    %v885 = vmul.f32 %v867, 0.5
    %v886 = vtanh.pop %v883
    %v887 = vtanh.pop %v884
    %v888 = vtanh.pop %v885
    %v889 = vmul.f32 %v886, 0.5
    %v890 = vmul.f32 %v887, 0.5
    %v891 = vmul.f32 %v888, 0.5
    %v892 = vadd.f32 %v889, 0.5
    %v893 = vadd.f32 %v890, 0.5
    %v894 = vadd.f32 %v891, 0.5
    %v895 = vtanh.pop %v880
    %v896 = vmul.f32 %v893, %v417
    %v897 = vmul.f32 %v892, %v895
    %v898 = vadd.f32 %v896, %v897
    %v899 = vtanh.pop %v898
    %v900 = vmul.f32 %v894, %v899
    %s901 = smul.u32 1, 4
    %s902 = smul.addr %s901, 8
    %s903 = scalar_lea.vmem [#allocation2], %s902
    %v904 = vld [vmem:[%s903] sm:$0xff]
    %v905 = vld [vmem:[%s903 + $0x8] sm:$0xff]
    %v906 = vld [vmem:[%s903 + $0x10] sm:$0xff]
    %v907 = vld [vmem:[%s903 + $0x18] sm:$0xff]
    %v908 = vpack.c.bf16 %v659, %v659
    %909 = vmatpush.bf16.msra.mxu0 %v550
    %910 = vmatpush.bf16.msra.mxu0 %v546
    %911 = vmatpush.bf16.msra.mxu0 %v542
    %912 = vmatpush.bf16.msra.mxu0 %v538
    %913 = vmatpush.bf16.msra.mxu0 %v534
    %914 = vmatpush.bf16.msra.mxu0 %v530
    %915 = vmatpush.bf16.msra.mxu0 %v526
    %916 = vmatpush.bf16.msra.mxu0 %v522
    %917 = vmatmul.bf16.gmra.mxu0 %v908
    %v918 = vpop.f32.mrf.mxu0
    %v919 = vadd.f32 0.0, %v918
    %v920 = vpop.f32.mrf.mxu0
    %921 = vdwg.mxu0
    %922 = vmatpush.bf16.msra.mxu0 %v551
    %923 = vmatpush.bf16.msra.mxu0 %v547
    %924 = vmatpush.bf16.msra.mxu0 %v543
    %925 = vmatpush.bf16.msra.mxu0 %v539
    %926 = vmatpush.bf16.msra.mxu0 %v535
    %927 = vmatpush.bf16.msra.mxu0 %v531
    %928 = vmatpush.bf16.msra.mxu0 %v527
    %929 = vmatpush.bf16.msra.mxu0 %v523
    %930 = vmatmul.bf16.gmra.mxu0 %v908
    %v931 = vpop.f32.mrf.mxu0
    %v932 = vadd.f32 0.0, %v931
    %v933 = vpop.f32.mrf.mxu0
    %934 = vdwg.mxu0
    %935 = vmatpush.bf16.msra.mxu0 %v552
    %936 = vmatpush.bf16.msra.mxu0 %v548
    %937 = vmatpush.bf16.msra.mxu0 %v544
    %938 = vmatpush.bf16.msra.mxu0 %v540
    %939 = vmatpush.bf16.msra.mxu0 %v536
    %940 = vmatpush.bf16.msra.mxu0 %v532
    %941 = vmatpush.bf16.msra.mxu0 %v528
    %942 = vmatpush.bf16.msra.mxu0 %v524
    %943 = vmatmul.bf16.gmra.mxu0 %v908
    %v944 = vpop.f32.mrf.mxu0
    %v945 = vadd.f32 0.0, %v944
    %v946 = vpop.f32.mrf.mxu0
    %947 = vdwg.mxu0
    %948 = vmatpush.bf16.msra.mxu0 %v553
    %949 = vmatpush.bf16.msra.mxu0 %v549
    %950 = vmatpush.bf16.msra.mxu0 %v545
    %951 = vmatpush.bf16.msra.mxu0 %v541
    %952 = vmatpush.bf16.msra.mxu0 %v537
    %953 = vmatpush.bf16.msra.mxu0 %v533
    %954 = vmatpush.bf16.msra.mxu0 %v529
    %955 = vmatpush.bf16.msra.mxu0 %v525
    %956 = vmatmul.bf16.gmra.mxu0 %v908
    %v957 = vpop.f32.mrf.mxu0
    %v958 = vadd.f32 0.0, %v957
    %v959 = vpop.f32.mrf.mxu0
    %960 = vdwg.mxu0
    %v961 = vadd.f32 %v904, %v919
    %v962 = vadd.f32 %v905, %v932
    %v963 = vadd.f32 %v906, %v945
    %v964 = vadd.f32 %v907, %v958
    %v965 = vmul.f32 %v961, 0.5
    %v966 = vmul.f32 %v962, 0.5
    %v967 = vmul.f32 %v963, 0.5
    %v968 = vtanh.pop %v965
    %v969 = vtanh.pop %v966
    %v970 = vtanh.pop %v967
    %v971 = vmul.f32 %v968, 0.5
    %v972 = vmul.f32 %v969, 0.5
    %v973 = vmul.f32 %v970, 0.5
    %v974 = vadd.f32 %v971, 0.5
    %v975 = vadd.f32 %v972, 0.5
    %v976 = vadd.f32 %v973, 0.5
    %v977 = vtanh.pop %v964
    %v978 = vmul.f32 %v975, %v657
    %v979 = vmul.f32 %v974, %v977
    %v980 = vadd.f32 %v978, %v979
    %v981 = vtanh.pop %v980
    %v982 = vmul.f32 %v976, %v981
    %v983 = vadd.f32 %v982, %v900
    %v984 = vpack.c.bf16 %v983, %v983
    %985 = vmatpush.bf16.msra.mxu0 %v795
    %986 = vmatpush.bf16.msra.mxu0 %v791
    %987 = vmatpush.bf16.msra.mxu0 %v787
    %988 = vmatpush.bf16.msra.mxu0 %v783
    %989 = vmatpush.bf16.msra.mxu0 %v779
    %990 = vmatpush.bf16.msra.mxu0 %v775
    %991 = vmatpush.bf16.msra.mxu0 %v771
    %992 = vmatpush.bf16.msra.mxu0 %v767
    %993 = vmatmul.bf16.gmra.mxu0 %v984
    %v994 = vpop.f32.mrf.mxu0
    %v995 = vadd.f32 %v663, %v994
    %v996 = vpop.f32.mrf.mxu0
    %997 = vdwg.mxu0
    %998 = vmatpush.bf16.msra.mxu0 %v796
    %999 = vmatpush.bf16.msra.mxu0 %v792
    %1000 = vmatpush.bf16.msra.mxu0 %v788
    %1001 = vmatpush.bf16.msra.mxu0 %v784
    %1002 = vmatpush.bf16.msra.mxu0 %v780
    %1003 = vmatpush.bf16.msra.mxu0 %v776
    %1004 = vmatpush.bf16.msra.mxu0 %v772
    %1005 = vmatpush.bf16.msra.mxu0 %v768
    %1006 = vmatmul.bf16.gmra.mxu0 %v984
    %v1007 = vpop.f32.mrf.mxu0
    %v1008 = vadd.f32 %v664, %v1007
    %v1009 = vpop.f32.mrf.mxu0
    %1010 = vdwg.mxu0
    %1011 = vmatpush.bf16.msra.mxu0 %v797
    %1012 = vmatpush.bf16.msra.mxu0 %v793
    %1013 = vmatpush.bf16.msra.mxu0 %v789
    %1014 = vmatpush.bf16.msra.mxu0 %v785
    %1015 = vmatpush.bf16.msra.mxu0 %v781
    %1016 = vmatpush.bf16.msra.mxu0 %v777
    %1017 = vmatpush.bf16.msra.mxu0 %v773
    %1018 = vmatpush.bf16.msra.mxu0 %v769
    %1019 = vmatmul.bf16.gmra.mxu0 %v984
    %v1020 = vpop.f32.mrf.mxu0
    %v1021 = vadd.f32 %v665, %v1020
    %v1022 = vpop.f32.mrf.mxu0
    %1023 = vdwg.mxu0
    %1024 = vmatpush.bf16.msra.mxu0 %v798
    %1025 = vmatpush.bf16.msra.mxu0 %v794
    %1026 = vmatpush.bf16.msra.mxu0 %v790
    %1027 = vmatpush.bf16.msra.mxu0 %v786
    %1028 = vmatpush.bf16.msra.mxu0 %v782
    %1029 = vmatpush.bf16.msra.mxu0 %v778
    %1030 = vmatpush.bf16.msra.mxu0 %v774
    %1031 = vmatpush.bf16.msra.mxu0 %v770
    %1032 = vmatmul.bf16.gmra.mxu0 %v984
    %v1033 = vpop.f32.mrf.mxu0
    %v1034 = vadd.f32 %v666, %v1033
    %v1035 = vpop.f32.mrf.mxu0
    %1036 = vdwg.mxu0
    %v1037 = vmul.f32 %v995, 0.5
    %v1038 = vmul.f32 %v1008, 0.5
    %v1039 = vmul.f32 %v1021, 0.5
    %v1040 = vtanh.pop %v1037
    %v1041 = vtanh.pop %v1038
    %v1042 = vtanh.pop %v1039
    %v1043 = vmul.f32 %v1040, 0.5
    %v1044 = vmul.f32 %v1041, 0.5
    %v1045 = vmul.f32 %v1042, 0.5
    %v1046 = vadd.f32 %v1043, 0.5
    %v1047 = vadd.f32 %v1044, 0.5
    %v1048 = vadd.f32 %v1045, 0.5
    %v1049 = vtanh.pop %v1034
    %v1050 = vmul.f32 %v1047, %v898
    %v1051 = vmul.f32 %v1046, %v1049
    %v1052 = vadd.f32 %v1050, %v1051
    %v1053 = vtanh.pop %v1052
    %v1054 = vmul.f32 %v1048, %v1053
    %s1055 = smul.u32 2, 4
    %s1056 = smul.addr %s1055, 8
    %s1057 = scalar_lea.vmem [#allocation2], %s1056
    %v1058 = vld [vmem:[%s1057] sm:$0xff]
    %v1059 = vld [vmem:[%s1057 + $0x8] sm:$0xff]
    %v1060 = vld [vmem:[%s1057 + $0x10] sm:$0xff]
    %v1061 = vld [vmem:[%s1057 + $0x18] sm:$0xff]
    %v1062 = vpack.c.bf16 %v982, %v982
    %1063 = vmatpush.bf16.msra.mxu0 %v550
    %1064 = vmatpush.bf16.msra.mxu0 %v546
    %1065 = vmatpush.bf16.msra.mxu0 %v542
    %1066 = vmatpush.bf16.msra.mxu0 %v538
    %1067 = vmatpush.bf16.msra.mxu0 %v534
    %1068 = vmatpush.bf16.msra.mxu0 %v530
    %1069 = vmatpush.bf16.msra.mxu0 %v526
    %1070 = vmatpush.bf16.msra.mxu0 %v522
    %1071 = vmatmul.bf16.gmra.mxu0 %v1062
    %v1072 = vpop.f32.mrf.mxu0
    %v1073 = vadd.f32 0.0, %v1072
    %v1074 = vpop.f32.mrf.mxu0
    %1075 = vdwg.mxu0
    %1076 = vmatpush.bf16.msra.mxu0 %v551
    %1077 = vmatpush.bf16.msra.mxu0 %v547
    %1078 = vmatpush.bf16.msra.mxu0 %v543
    %1079 = vmatpush.bf16.msra.mxu0 %v539
    %1080 = vmatpush.bf16.msra.mxu0 %v535
    %1081 = vmatpush.bf16.msra.mxu0 %v531
    %1082 = vmatpush.bf16.msra.mxu0 %v527
    %1083 = vmatpush.bf16.msra.mxu0 %v523
    %1084 = vmatmul.bf16.gmra.mxu0 %v1062
    %v1085 = vpop.f32.mrf.mxu0
    %v1086 = vadd.f32 0.0, %v1085
    %v1087 = vpop.f32.mrf.mxu0
    %1088 = vdwg.mxu0
    %1089 = vmatpush.bf16.msra.mxu0 %v552
    %1090 = vmatpush.bf16.msra.mxu0 %v548
    %1091 = vmatpush.bf16.msra.mxu0 %v544
    %1092 = vmatpush.bf16.msra.mxu0 %v540
    %1093 = vmatpush.bf16.msra.mxu0 %v536
    %1094 = vmatpush.bf16.msra.mxu0 %v532
    %1095 = vmatpush.bf16.msra.mxu0 %v528
    %1096 = vmatpush.bf16.msra.mxu0 %v524
    %1097 = vmatmul.bf16.gmra.mxu0 %v1062
    %v1098 = vpop.f32.mrf.mxu0
    %v1099 = vadd.f32 0.0, %v1098
    %v1100 = vpop.f32.mrf.mxu0
    %1101 = vdwg.mxu0
    %1102 = vmatpush.bf16.msra.mxu0 %v553
    %1103 = vmatpush.bf16.msra.mxu0 %v549
    %1104 = vmatpush.bf16.msra.mxu0 %v545
    %1105 = vmatpush.bf16.msra.mxu0 %v541
    %1106 = vmatpush.bf16.msra.mxu0 %v537
    %1107 = vmatpush.bf16.msra.mxu0 %v533
    %1108 = vmatpush.bf16.msra.mxu0 %v529
    %1109 = vmatpush.bf16.msra.mxu0 %v525
    %1110 = vmatmul.bf16.gmra.mxu0 %v1062
    %v1111 = vpop.f32.mrf.mxu0
    %v1112 = vadd.f32 0.0, %v1111
    %v1113 = vpop.f32.mrf.mxu0
    %1114 = vdwg.mxu0
    %v1115 = vadd.f32 %v1058, %v1073
    %v1116 = vadd.f32 %v1059, %v1086
    %v1117 = vadd.f32 %v1060, %v1099
    %v1118 = vadd.f32 %v1061, %v1112
    %v1119 = vmul.f32 %v1115, 0.5
    %v1120 = vmul.f32 %v1116, 0.5
    %v1121 = vmul.f32 %v1117, 0.5
    %v1122 = vtanh.pop %v1119
    %v1123 = vtanh.pop %v1120
    %v1124 = vtanh.pop %v1121
    %v1125 = vmul.f32 %v1122, 0.5
    %v1126 = vmul.f32 %v1123, 0.5
    %v1127 = vmul.f32 %v1124, 0.5
    %v1128 = vadd.f32 %v1125, 0.5
    %v1129 = vadd.f32 %v1126, 0.5
    %v1130 = vadd.f32 %v1127, 0.5
    %v1131 = vtanh.pop %v1118
    %v1132 = vmul.f32 %v1129, %v980
    %v1133 = vmul.f32 %v1128, %v1131
    %v1134 = vadd.f32 %v1132, %v1133
    %v1135 = vtanh.pop %v1134
    %v1136 = vmul.f32 %v1130, %v1135
    %v1137 = vadd.f32 %v1136, %v1054
    %v1138 = vpack.c.bf16 %v1137, %v1137
    %1139 = vmatpush.bf16.msra.mxu0 %v795
    %1140 = vmatpush.bf16.msra.mxu0 %v791
    %1141 = vmatpush.bf16.msra.mxu0 %v787
    %1142 = vmatpush.bf16.msra.mxu0 %v783
    %1143 = vmatpush.bf16.msra.mxu0 %v779
    %1144 = vmatpush.bf16.msra.mxu0 %v775
    %1145 = vmatpush.bf16.msra.mxu0 %v771
    %1146 = vmatpush.bf16.msra.mxu0 %v767
    %1147 = vmatmul.bf16.gmra.mxu0 %v1138
    %v1148 = vpop.f32.mrf.mxu0
    %v1149 = vadd.f32 %v663, %v1148
    %v1150 = vpop.f32.mrf.mxu0
    %1151 = vdwg.mxu0
    %1152 = vmatpush.bf16.msra.mxu0 %v796
    %1153 = vmatpush.bf16.msra.mxu0 %v792
    %1154 = vmatpush.bf16.msra.mxu0 %v788
    %1155 = vmatpush.bf16.msra.mxu0 %v784
    %1156 = vmatpush.bf16.msra.mxu0 %v780
    %1157 = vmatpush.bf16.msra.mxu0 %v776
    %1158 = vmatpush.bf16.msra.mxu0 %v772
    %1159 = vmatpush.bf16.msra.mxu0 %v768
    %1160 = vmatmul.bf16.gmra.mxu0 %v1138
    %v1161 = vpop.f32.mrf.mxu0
    %v1162 = vadd.f32 %v664, %v1161
    %v1163 = vpop.f32.mrf.mxu0
    %1164 = vdwg.mxu0
    %1165 = vmatpush.bf16.msra.mxu0 %v797
    %1166 = vmatpush.bf16.msra.mxu0 %v793
    %1167 = vmatpush.bf16.msra.mxu0 %v789
    %1168 = vmatpush.bf16.msra.mxu0 %v785
    %1169 = vmatpush.bf16.msra.mxu0 %v781
    %1170 = vmatpush.bf16.msra.mxu0 %v777
    %1171 = vmatpush.bf16.msra.mxu0 %v773
    %1172 = vmatpush.bf16.msra.mxu0 %v769
    %1173 = vmatmul.bf16.gmra.mxu0 %v1138
    %v1174 = vpop.f32.mrf.mxu0
    %v1175 = vadd.f32 %v665, %v1174
    %v1176 = vpop.f32.mrf.mxu0
    %1177 = vdwg.mxu0
    %1178 = vmatpush.bf16.msra.mxu0 %v798
    %1179 = vmatpush.bf16.msra.mxu0 %v794
    %1180 = vmatpush.bf16.msra.mxu0 %v790
    %1181 = vmatpush.bf16.msra.mxu0 %v786
    %1182 = vmatpush.bf16.msra.mxu0 %v782
    %1183 = vmatpush.bf16.msra.mxu0 %v778
    %1184 = vmatpush.bf16.msra.mxu0 %v774
    %1185 = vmatpush.bf16.msra.mxu0 %v770
    %1186 = vmatmul.bf16.gmra.mxu0 %v1138
    %v1187 = vpop.f32.mrf.mxu0
    %v1188 = vadd.f32 %v666, %v1187
    %v1189 = vpop.f32.mrf.mxu0
    %1190 = vdwg.mxu0
    %v1191 = vmul.f32 %v1149, 0.5
    %v1192 = vmul.f32 %v1162, 0.5
    %v1193 = vmul.f32 %v1175, 0.5
    %v1194 = vtanh.pop %v1191
    %v1195 = vtanh.pop %v1192
    %v1196 = vtanh.pop %v1193
    %v1197 = vmul.f32 %v1194, 0.5
    %v1198 = vmul.f32 %v1195, 0.5
    %v1199 = vmul.f32 %v1196, 0.5
    %v1200 = vadd.f32 %v1197, 0.5
    %v1201 = vadd.f32 %v1198, 0.5
    %v1202 = vadd.f32 %v1199, 0.5
    %v1203 = vtanh.pop %v1188
    %v1204 = vmul.f32 %v1201, %v1052
    %v1205 = vmul.f32 %v1200, %v1203
    %v1206 = vadd.f32 %v1204, %v1205
    %v1207 = vtanh.pop %v1206
    %v1208 = vmul.f32 %v1202, %v1207
    %s1209 = smul.u32 3, 4
    %s1210 = smul.addr %s1209, 8
    %s1211 = scalar_lea.vmem [#allocation2], %s1210
    %v1212 = vld [vmem:[%s1211] sm:$0xff]
    %v1213 = vld [vmem:[%s1211 + $0x8] sm:$0xff]
    %v1214 = vld [vmem:[%s1211 + $0x10] sm:$0xff]
    %v1215 = vld [vmem:[%s1211 + $0x18] sm:$0xff]
    %v1216 = vpack.c.bf16 %v1136, %v1136
    %1217 = vmatpush.bf16.msra.mxu0 %v550
    %1218 = vmatpush.bf16.msra.mxu0 %v546
    %1219 = vmatpush.bf16.msra.mxu0 %v542
    %1220 = vmatpush.bf16.msra.mxu0 %v538
    %1221 = vmatpush.bf16.msra.mxu0 %v534
    %1222 = vmatpush.bf16.msra.mxu0 %v530
    %1223 = vmatpush.bf16.msra.mxu0 %v526
    %1224 = vmatpush.bf16.msra.mxu0 %v522
    %1225 = vmatmul.bf16.gmra.mxu0 %v1216
    %v1226 = vpop.f32.mrf.mxu0
    %v1227 = vadd.f32 0.0, %v1226
    %v1228 = vpop.f32.mrf.mxu0
    %1229 = vdwg.mxu0
    %1230 = vmatpush.bf16.msra.mxu0 %v551
    %1231 = vmatpush.bf16.msra.mxu0 %v547
    %1232 = vmatpush.bf16.msra.mxu0 %v543
    %1233 = vmatpush.bf16.msra.mxu0 %v539
    %1234 = vmatpush.bf16.msra.mxu0 %v535
    %1235 = vmatpush.bf16.msra.mxu0 %v531
    %1236 = vmatpush.bf16.msra.mxu0 %v527
    %1237 = vmatpush.bf16.msra.mxu0 %v523
    %1238 = vmatmul.bf16.gmra.mxu0 %v1216
    %v1239 = vpop.f32.mrf.mxu0
    %v1240 = vadd.f32 0.0, %v1239
    %v1241 = vpop.f32.mrf.mxu0
    %1242 = vdwg.mxu0
    %1243 = vmatpush.bf16.msra.mxu0 %v552
    %1244 = vmatpush.bf16.msra.mxu0 %v548
    %1245 = vmatpush.bf16.msra.mxu0 %v544
    %1246 = vmatpush.bf16.msra.mxu0 %v540
    %1247 = vmatpush.bf16.msra.mxu0 %v536
    %1248 = vmatpush.bf16.msra.mxu0 %v532
    %1249 = vmatpush.bf16.msra.mxu0 %v528
    %1250 = vmatpush.bf16.msra.mxu0 %v524
    %1251 = vmatmul.bf16.gmra.mxu0 %v1216
    %v1252 = vpop.f32.mrf.mxu0
    %v1253 = vadd.f32 0.0, %v1252
    %v1254 = vpop.f32.mrf.mxu0
    %1255 = vdwg.mxu0
    %1256 = vmatpush.bf16.msra.mxu0 %v553
    %1257 = vmatpush.bf16.msra.mxu0 %v549
    %1258 = vmatpush.bf16.msra.mxu0 %v545
    %1259 = vmatpush.bf16.msra.mxu0 %v541
    %1260 = vmatpush.bf16.msra.mxu0 %v537
    %1261 = vmatpush.bf16.msra.mxu0 %v533
    %1262 = vmatpush.bf16.msra.mxu0 %v529
    %1263 = vmatpush.bf16.msra.mxu0 %v525
    %1264 = vmatmul.bf16.gmra.mxu0 %v1216
    %v1265 = vpop.f32.mrf.mxu0
    %v1266 = vadd.f32 0.0, %v1265
    %v1267 = vpop.f32.mrf.mxu0
    %1268 = vdwg.mxu0
    %v1269 = vadd.f32 %v1212, %v1227
    %v1270 = vadd.f32 %v1213, %v1240
    %v1271 = vadd.f32 %v1214, %v1253
    %v1272 = vadd.f32 %v1215, %v1266
    %v1273 = vmul.f32 %v1269, 0.5
    %v1274 = vmul.f32 %v1270, 0.5
    %v1275 = vmul.f32 %v1271, 0.5
    %v1276 = vtanh.pop %v1273
    %v1277 = vtanh.pop %v1274
    %v1278 = vtanh.pop %v1275
    %v1279 = vmul.f32 %v1276, 0.5
    %v1280 = vmul.f32 %v1277, 0.5
    %v1281 = vmul.f32 %v1278, 0.5
    %v1282 = vadd.f32 %v1279, 0.5
    %v1283 = vadd.f32 %v1280, 0.5
    %v1284 = vadd.f32 %v1281, 0.5
    %v1285 = vtanh.pop %v1272
    %v1286 = vmul.f32 %v1283, %v1134
    %v1287 = vmul.f32 %v1282, %v1285
    %v1288 = vadd.f32 %v1286, %v1287
    %v1289 = vtanh.pop %v1288
    %v1290 = vmul.f32 %v1284, %v1289
    %v1291 = vadd.f32 %v1290, %v1208
    %v1292 = vpack.c.bf16 %v1291, %v1291
    %1293 = vmatpush.bf16.msra.mxu0 %v795
    %1294 = vmatpush.bf16.msra.mxu0 %v791
    %1295 = vmatpush.bf16.msra.mxu0 %v787
    %1296 = vmatpush.bf16.msra.mxu0 %v783
    %1297 = vmatpush.bf16.msra.mxu0 %v779
    %1298 = vmatpush.bf16.msra.mxu0 %v775
    %1299 = vmatpush.bf16.msra.mxu0 %v771
    %1300 = vmatpush.bf16.msra.mxu0 %v767
    %1301 = vmatmul.bf16.gmra.mxu0 %v1292
    %v1302 = vpop.f32.mrf.mxu0
    %v1303 = vadd.f32 %v663, %v1302
    %v1304 = vpop.f32.mrf.mxu0
    %1305 = vdwg.mxu0
    %1306 = vmatpush.bf16.msra.mxu0 %v796
    %1307 = vmatpush.bf16.msra.mxu0 %v792
    %1308 = vmatpush.bf16.msra.mxu0 %v788
    %1309 = vmatpush.bf16.msra.mxu0 %v784
    %1310 = vmatpush.bf16.msra.mxu0 %v780
    %1311 = vmatpush.bf16.msra.mxu0 %v776
    %1312 = vmatpush.bf16.msra.mxu0 %v772
    %1313 = vmatpush.bf16.msra.mxu0 %v768
    %1314 = vmatmul.bf16.gmra.mxu0 %v1292
    %v1315 = vpop.f32.mrf.mxu0
    %v1316 = vadd.f32 %v664, %v1315
    %v1317 = vpop.f32.mrf.mxu0
    %1318 = vdwg.mxu0
    %1319 = vmatpush.bf16.msra.mxu0 %v797
    %1320 = vmatpush.bf16.msra.mxu0 %v793
    %1321 = vmatpush.bf16.msra.mxu0 %v789
    %1322 = vmatpush.bf16.msra.mxu0 %v785
    %1323 = vmatpush.bf16.msra.mxu0 %v781
    %1324 = vmatpush.bf16.msra.mxu0 %v777
    %1325 = vmatpush.bf16.msra.mxu0 %v773
    %1326 = vmatpush.bf16.msra.mxu0 %v769
    %1327 = vmatmul.bf16.gmra.mxu0 %v1292
    %v1328 = vpop.f32.mrf.mxu0
    %v1329 = vadd.f32 %v665, %v1328
    %v1330 = vpop.f32.mrf.mxu0
    %1331 = vdwg.mxu0
    %1332 = vmatpush.bf16.msra.mxu0 %v798
    %1333 = vmatpush.bf16.msra.mxu0 %v794
    %1334 = vmatpush.bf16.msra.mxu0 %v790
    %1335 = vmatpush.bf16.msra.mxu0 %v786
    %1336 = vmatpush.bf16.msra.mxu0 %v782
    %1337 = vmatpush.bf16.msra.mxu0 %v778
    %1338 = vmatpush.bf16.msra.mxu0 %v774
    %1339 = vmatpush.bf16.msra.mxu0 %v770
    %1340 = vmatmul.bf16.gmra.mxu0 %v1292
    %v1341 = vpop.f32.mrf.mxu0
    %v1342 = vadd.f32 %v666, %v1341
    %v1343 = vpop.f32.mrf.mxu0
    %1344 = vdwg.mxu0
    %v1345 = vmul.f32 %v1303, 0.5
    %v1346 = vmul.f32 %v1316, 0.5
    %v1347 = vmul.f32 %v1329, 0.5
    %v1348 = vtanh.pop %v1345
    %v1349 = vtanh.pop %v1346
    %v1350 = vtanh.pop %v1347
    %v1351 = vmul.f32 %v1348, 0.5
    %v1352 = vmul.f32 %v1349, 0.5
    %v1353 = vmul.f32 %v1350, 0.5
    %v1354 = vadd.f32 %v1351, 0.5
    %v1355 = vadd.f32 %v1352, 0.5
    %v1356 = vadd.f32 %v1353, 0.5
    %v1357 = vtanh.pop %v1342
    %v1358 = vmul.f32 %v1355, %v1206
    %v1359 = vmul.f32 %v1354, %v1357
    %v1360 = vadd.f32 %v1358, %v1359
    %v1361 = vtanh.pop %v1360
    %v1362 = vmul.f32 %v1356, %v1361
    %s1363 = smul.u32 4, 4
    %s1364 = smul.addr %s1363, 8
    %s1365 = scalar_lea.vmem [#allocation2], %s1364
    %v1366 = vld [vmem:[%s1365] sm:$0xff]
    %v1367 = vld [vmem:[%s1365 + $0x8] sm:$0xff]
    %v1368 = vld [vmem:[%s1365 + $0x10] sm:$0xff]
    %v1369 = vld [vmem:[%s1365 + $0x18] sm:$0xff]
    %v1370 = vpack.c.bf16 %v1290, %v1290
    %1371 = vmatpush.bf16.msra.mxu0 %v550
    %1372 = vmatpush.bf16.msra.mxu0 %v546
    %1373 = vmatpush.bf16.msra.mxu0 %v542
    %1374 = vmatpush.bf16.msra.mxu0 %v538
    %1375 = vmatpush.bf16.msra.mxu0 %v534
    %1376 = vmatpush.bf16.msra.mxu0 %v530
    %1377 = vmatpush.bf16.msra.mxu0 %v526
    %1378 = vmatpush.bf16.msra.mxu0 %v522
    %1379 = vmatmul.bf16.gmra.mxu0 %v1370
    %v1380 = vpop.f32.mrf.mxu0
    %v1381 = vadd.f32 0.0, %v1380
    %v1382 = vpop.f32.mrf.mxu0
    %1383 = vdwg.mxu0
    %1384 = vmatpush.bf16.msra.mxu0 %v551
    %1385 = vmatpush.bf16.msra.mxu0 %v547
    %1386 = vmatpush.bf16.msra.mxu0 %v543
    %1387 = vmatpush.bf16.msra.mxu0 %v539
    %1388 = vmatpush.bf16.msra.mxu0 %v535
    %1389 = vmatpush.bf16.msra.mxu0 %v531
    %1390 = vmatpush.bf16.msra.mxu0 %v527
    %1391 = vmatpush.bf16.msra.mxu0 %v523
    %1392 = vmatmul.bf16.gmra.mxu0 %v1370
    %v1393 = vpop.f32.mrf.mxu0
    %v1394 = vadd.f32 0.0, %v1393
    %v1395 = vpop.f32.mrf.mxu0
    %1396 = vdwg.mxu0
    %1397 = vmatpush.bf16.msra.mxu0 %v552
    %1398 = vmatpush.bf16.msra.mxu0 %v548
    %1399 = vmatpush.bf16.msra.mxu0 %v544
    %1400 = vmatpush.bf16.msra.mxu0 %v540
    %1401 = vmatpush.bf16.msra.mxu0 %v536
    %1402 = vmatpush.bf16.msra.mxu0 %v532
    %1403 = vmatpush.bf16.msra.mxu0 %v528
    %1404 = vmatpush.bf16.msra.mxu0 %v524
    %1405 = vmatmul.bf16.gmra.mxu0 %v1370
    %v1406 = vpop.f32.mrf.mxu0
    %v1407 = vadd.f32 0.0, %v1406
    %v1408 = vpop.f32.mrf.mxu0
    %1409 = vdwg.mxu0
    %1410 = vmatpush.bf16.msra.mxu0 %v553
    %1411 = vmatpush.bf16.msra.mxu0 %v549
    %1412 = vmatpush.bf16.msra.mxu0 %v545
    %1413 = vmatpush.bf16.msra.mxu0 %v541
    %1414 = vmatpush.bf16.msra.mxu0 %v537
    %1415 = vmatpush.bf16.msra.mxu0 %v533
    %1416 = vmatpush.bf16.msra.mxu0 %v529
    %1417 = vmatpush.bf16.msra.mxu0 %v525
    %1418 = vmatmul.bf16.gmra.mxu0 %v1370
    %v1419 = vpop.f32.mrf.mxu0
    %v1420 = vadd.f32 0.0, %v1419
    %v1421 = vpop.f32.mrf.mxu0
    %1422 = vdwg.mxu0
    %v1423 = vadd.f32 %v1366, %v1381
    %v1424 = vadd.f32 %v1367, %v1394
    %v1425 = vadd.f32 %v1368, %v1407
    %v1426 = vadd.f32 %v1369, %v1420
    %v1427 = vmul.f32 %v1423, 0.5
    %v1428 = vmul.f32 %v1424, 0.5
    %v1429 = vmul.f32 %v1425, 0.5
    %v1430 = vtanh.pop %v1427
    %v1431 = vtanh.pop %v1428
    %v1432 = vtanh.pop %v1429
    %v1433 = vmul.f32 %v1430, 0.5
    %v1434 = vmul.f32 %v1431, 0.5
    %v1435 = vmul.f32 %v1432, 0.5
    %v1436 = vadd.f32 %v1433, 0.5
    %v1437 = vadd.f32 %v1434, 0.5
    %v1438 = vadd.f32 %v1435, 0.5
    %v1439 = vtanh.pop %v1426
    %v1440 = vmul.f32 %v1437, %v1288
    %v1441 = vmul.f32 %v1436, %v1439
    %v1442 = vadd.f32 %v1440, %v1441
    %v1443 = vtanh.pop %v1442
    %v1444 = vmul.f32 %v1438, %v1443
    %v1445 = vadd.f32 %v1444, %v1362
    %v1446 = vpack.c.bf16 %v1445, %v1445
    %1447 = vmatpush.bf16.msra.mxu0 %v795
    %1448 = vmatpush.bf16.msra.mxu0 %v791
    %1449 = vmatpush.bf16.msra.mxu0 %v787
    %1450 = vmatpush.bf16.msra.mxu0 %v783
    %1451 = vmatpush.bf16.msra.mxu0 %v779
    %1452 = vmatpush.bf16.msra.mxu0 %v775
    %1453 = vmatpush.bf16.msra.mxu0 %v771
    %1454 = vmatpush.bf16.msra.mxu0 %v767
    %1455 = vmatmul.bf16.gmra.mxu0 %v1446
    %v1456 = vpop.f32.mrf.mxu0
    %v1457 = vadd.f32 %v663, %v1456
    %v1458 = vpop.f32.mrf.mxu0
    %1459 = vdwg.mxu0
    %1460 = vmatpush.bf16.msra.mxu0 %v796
    %1461 = vmatpush.bf16.msra.mxu0 %v792
    %1462 = vmatpush.bf16.msra.mxu0 %v788
    %1463 = vmatpush.bf16.msra.mxu0 %v784
    %1464 = vmatpush.bf16.msra.mxu0 %v780
    %1465 = vmatpush.bf16.msra.mxu0 %v776
    %1466 = vmatpush.bf16.msra.mxu0 %v772
    %1467 = vmatpush.bf16.msra.mxu0 %v768
    %1468 = vmatmul.bf16.gmra.mxu0 %v1446
    %v1469 = vpop.f32.mrf.mxu0
    %v1470 = vadd.f32 %v664, %v1469
    %v1471 = vpop.f32.mrf.mxu0
    %1472 = vdwg.mxu0
    %1473 = vmatpush.bf16.msra.mxu0 %v797
    %1474 = vmatpush.bf16.msra.mxu0 %v793
    %1475 = vmatpush.bf16.msra.mxu0 %v789
    %1476 = vmatpush.bf16.msra.mxu0 %v785
    %1477 = vmatpush.bf16.msra.mxu0 %v781
    %1478 = vmatpush.bf16.msra.mxu0 %v777
    %1479 = vmatpush.bf16.msra.mxu0 %v773
    %1480 = vmatpush.bf16.msra.mxu0 %v769
    %1481 = vmatmul.bf16.gmra.mxu0 %v1446
    %v1482 = vpop.f32.mrf.mxu0
    %v1483 = vadd.f32 %v665, %v1482
    %v1484 = vpop.f32.mrf.mxu0
    %1485 = vdwg.mxu0
    %1486 = vmatpush.bf16.msra.mxu0 %v798
    %1487 = vmatpush.bf16.msra.mxu0 %v794
    %1488 = vmatpush.bf16.msra.mxu0 %v790
    %1489 = vmatpush.bf16.msra.mxu0 %v786
    %1490 = vmatpush.bf16.msra.mxu0 %v782
    %1491 = vmatpush.bf16.msra.mxu0 %v778
    %1492 = vmatpush.bf16.msra.mxu0 %v774
    %1493 = vmatpush.bf16.msra.mxu0 %v770
    %1494 = vmatmul.bf16.gmra.mxu0 %v1446
    %v1495 = vpop.f32.mrf.mxu0
    %v1496 = vadd.f32 %v666, %v1495
    %v1497 = vpop.f32.mrf.mxu0
    %1498 = vdwg.mxu0
    %v1499 = vmul.f32 %v1457, 0.5
    %v1500 = vmul.f32 %v1470, 0.5
    %v1501 = vmul.f32 %v1483, 0.5
    %v1502 = vtanh.pop %v1499
    %v1503 = vtanh.pop %v1500
    %v1504 = vtanh.pop %v1501
    %v1505 = vmul.f32 %v1502, 0.5
    %v1506 = vmul.f32 %v1503, 0.5
    %v1507 = vmul.f32 %v1504, 0.5
    %v1508 = vadd.f32 %v1505, 0.5
    %v1509 = vadd.f32 %v1506, 0.5
    %v1510 = vadd.f32 %v1507, 0.5
    %v1511 = vtanh.pop %v1496
    %v1512 = vmul.f32 %v1509, %v1360
    %v1513 = vmul.f32 %v1508, %v1511
    %v1514 = vadd.f32 %v1512, %v1513
    %v1515 = vtanh.pop %v1514
    %v1516 = vmul.f32 %v1510, %v1515
    %s1517 = smul.u32 5, 4
    %s1518 = smul.addr %s1517, 8
    %s1519 = scalar_lea.vmem [#allocation2], %s1518
    %v1520 = vld [vmem:[%s1519] sm:$0xff]
    %v1521 = vld [vmem:[%s1519 + $0x8] sm:$0xff]
    %v1522 = vld [vmem:[%s1519 + $0x10] sm:$0xff]
    %v1523 = vld [vmem:[%s1519 + $0x18] sm:$0xff]
    %v1524 = vpack.c.bf16 %v1444, %v1444
    %1525 = vmatpush.bf16.msra.mxu0 %v550
    %1526 = vmatpush.bf16.msra.mxu0 %v546
    %1527 = vmatpush.bf16.msra.mxu0 %v542
    %1528 = vmatpush.bf16.msra.mxu0 %v538
    %1529 = vmatpush.bf16.msra.mxu0 %v534
    %1530 = vmatpush.bf16.msra.mxu0 %v530
    %1531 = vmatpush.bf16.msra.mxu0 %v526
    %1532 = vmatpush.bf16.msra.mxu0 %v522
    %1533 = vmatmul.bf16.gmra.mxu0 %v1524
    %v1534 = vpop.f32.mrf.mxu0
    %v1535 = vadd.f32 0.0, %v1534
    %v1536 = vpop.f32.mrf.mxu0
    %1537 = vdwg.mxu0
    %1538 = vmatpush.bf16.msra.mxu0 %v551
    %1539 = vmatpush.bf16.msra.mxu0 %v547
    %1540 = vmatpush.bf16.msra.mxu0 %v543
    %1541 = vmatpush.bf16.msra.mxu0 %v539
    %1542 = vmatpush.bf16.msra.mxu0 %v535
    %1543 = vmatpush.bf16.msra.mxu0 %v531
    %1544 = vmatpush.bf16.msra.mxu0 %v527
    %1545 = vmatpush.bf16.msra.mxu0 %v523
    %1546 = vmatmul.bf16.gmra.mxu0 %v1524
    %v1547 = vpop.f32.mrf.mxu0
    %v1548 = vadd.f32 0.0, %v1547
    %v1549 = vpop.f32.mrf.mxu0
    %1550 = vdwg.mxu0
    %1551 = vmatpush.bf16.msra.mxu0 %v552
    %1552 = vmatpush.bf16.msra.mxu0 %v548
    %1553 = vmatpush.bf16.msra.mxu0 %v544
    %1554 = vmatpush.bf16.msra.mxu0 %v540
    %1555 = vmatpush.bf16.msra.mxu0 %v536
    %1556 = vmatpush.bf16.msra.mxu0 %v532
    %1557 = vmatpush.bf16.msra.mxu0 %v528
    %1558 = vmatpush.bf16.msra.mxu0 %v524
    %1559 = vmatmul.bf16.gmra.mxu0 %v1524
    %v1560 = vpop.f32.mrf.mxu0
    %v1561 = vadd.f32 0.0, %v1560
    %v1562 = vpop.f32.mrf.mxu0
    %1563 = vdwg.mxu0
    %1564 = vmatpush.bf16.msra.mxu0 %v553
    %1565 = vmatpush.bf16.msra.mxu0 %v549
    %1566 = vmatpush.bf16.msra.mxu0 %v545
    %1567 = vmatpush.bf16.msra.mxu0 %v541
    %1568 = vmatpush.bf16.msra.mxu0 %v537
    %1569 = vmatpush.bf16.msra.mxu0 %v533
    %1570 = vmatpush.bf16.msra.mxu0 %v529
    %1571 = vmatpush.bf16.msra.mxu0 %v525
    %1572 = vmatmul.bf16.gmra.mxu0 %v1524
    %v1573 = vpop.f32.mrf.mxu0
    %v1574 = vadd.f32 0.0, %v1573
    %v1575 = vpop.f32.mrf.mxu0
    %1576 = vdwg.mxu0
    %v1577 = vadd.f32 %v1520, %v1535
    %v1578 = vadd.f32 %v1521, %v1548
    %v1579 = vadd.f32 %v1522, %v1561
    %v1580 = vadd.f32 %v1523, %v1574
    %v1581 = vmul.f32 %v1577, 0.5
    %v1582 = vmul.f32 %v1578, 0.5
    %v1583 = vmul.f32 %v1579, 0.5
    %v1584 = vtanh.pop %v1581
    %v1585 = vtanh.pop %v1582
    %v1586 = vtanh.pop %v1583
    %v1587 = vmul.f32 %v1584, 0.5
    %v1588 = vmul.f32 %v1585, 0.5
    %v1589 = vmul.f32 %v1586, 0.5
    %v1590 = vadd.f32 %v1587, 0.5
    %v1591 = vadd.f32 %v1588, 0.5
    %v1592 = vadd.f32 %v1589, 0.5
    %v1593 = vtanh.pop %v1580
    %v1594 = vmul.f32 %v1591, %v1442
    %v1595 = vmul.f32 %v1590, %v1593
    %v1596 = vadd.f32 %v1594, %v1595
    %v1597 = vtanh.pop %v1596
    %v1598 = vmul.f32 %v1592, %v1597
    %v1599 = vadd.f32 %v1598, %v1516
    %v1600 = vpack.c.bf16 %v1599, %v1599
    %1601 = vmatpush.bf16.msra.mxu0 %v795
    %1602 = vmatpush.bf16.msra.mxu0 %v791
    %1603 = vmatpush.bf16.msra.mxu0 %v787
    %1604 = vmatpush.bf16.msra.mxu0 %v783
    %1605 = vmatpush.bf16.msra.mxu0 %v779
    %1606 = vmatpush.bf16.msra.mxu0 %v775
    %1607 = vmatpush.bf16.msra.mxu0 %v771
    %1608 = vmatpush.bf16.msra.mxu0 %v767
    %1609 = vmatmul.bf16.gmra.mxu0 %v1600
    %v1610 = vpop.f32.mrf.mxu0
    %v1611 = vadd.f32 %v663, %v1610
    %v1612 = vpop.f32.mrf.mxu0
    %1613 = vdwg.mxu0
    %1614 = vmatpush.bf16.msra.mxu0 %v796
    %1615 = vmatpush.bf16.msra.mxu0 %v792
    %1616 = vmatpush.bf16.msra.mxu0 %v788
    %1617 = vmatpush.bf16.msra.mxu0 %v784
    %1618 = vmatpush.bf16.msra.mxu0 %v780
    %1619 = vmatpush.bf16.msra.mxu0 %v776
    %1620 = vmatpush.bf16.msra.mxu0 %v772
    %1621 = vmatpush.bf16.msra.mxu0 %v768
    %1622 = vmatmul.bf16.gmra.mxu0 %v1600
    %v1623 = vpop.f32.mrf.mxu0
    %v1624 = vadd.f32 %v664, %v1623
    %v1625 = vpop.f32.mrf.mxu0
    %1626 = vdwg.mxu0
    %1627 = vmatpush.bf16.msra.mxu0 %v797
    %1628 = vmatpush.bf16.msra.mxu0 %v793
    %1629 = vmatpush.bf16.msra.mxu0 %v789
    %1630 = vmatpush.bf16.msra.mxu0 %v785
    %1631 = vmatpush.bf16.msra.mxu0 %v781
    %1632 = vmatpush.bf16.msra.mxu0 %v777
    %1633 = vmatpush.bf16.msra.mxu0 %v773
    %1634 = vmatpush.bf16.msra.mxu0 %v769
    %1635 = vmatmul.bf16.gmra.mxu0 %v1600
    %v1636 = vpop.f32.mrf.mxu0
    %v1637 = vadd.f32 %v665, %v1636
    %v1638 = vpop.f32.mrf.mxu0
    %1639 = vdwg.mxu0
    %1640 = vmatpush.bf16.msra.mxu0 %v798
    %1641 = vmatpush.bf16.msra.mxu0 %v794
    %1642 = vmatpush.bf16.msra.mxu0 %v790
    %1643 = vmatpush.bf16.msra.mxu0 %v786
    %1644 = vmatpush.bf16.msra.mxu0 %v782
    %1645 = vmatpush.bf16.msra.mxu0 %v778
    %1646 = vmatpush.bf16.msra.mxu0 %v774
    %1647 = vmatpush.bf16.msra.mxu0 %v770
    %1648 = vmatmul.bf16.gmra.mxu0 %v1600
    %v1649 = vpop.f32.mrf.mxu0
    %v1650 = vadd.f32 %v666, %v1649
    %v1651 = vpop.f32.mrf.mxu0
    %1652 = vdwg.mxu0
    %v1653 = vmul.f32 %v1611, 0.5
    %v1654 = vmul.f32 %v1624, 0.5
    %v1655 = vmul.f32 %v1637, 0.5
    %v1656 = vtanh.pop %v1653
    %v1657 = vtanh.pop %v1654
    %v1658 = vtanh.pop %v1655
    %v1659 = vmul.f32 %v1656, 0.5
    %v1660 = vmul.f32 %v1657, 0.5
    %v1661 = vmul.f32 %v1658, 0.5
    %v1662 = vadd.f32 %v1659, 0.5
    %v1663 = vadd.f32 %v1660, 0.5
    %v1664 = vadd.f32 %v1661, 0.5
    %v1665 = vtanh.pop %v1650
    %v1666 = vmul.f32 %v1663, %v1514
    %v1667 = vmul.f32 %v1662, %v1665
    %v1668 = vadd.f32 %v1666, %v1667
    %v1669 = vtanh.pop %v1668
    %v1670 = vmul.f32 %v1664, %v1669
    %s1671 = smul.u32 6, 4
    %s1672 = smul.addr %s1671, 8
    %s1673 = scalar_lea.vmem [#allocation2], %s1672
    %v1674 = vld [vmem:[%s1673] sm:$0xff]
    %v1675 = vld [vmem:[%s1673 + $0x8] sm:$0xff]
    %v1676 = vld [vmem:[%s1673 + $0x10] sm:$0xff]
    %v1677 = vld [vmem:[%s1673 + $0x18] sm:$0xff]
    %v1678 = vpack.c.bf16 %v1598, %v1598
    %1679 = vmatpush.bf16.msra.mxu0 %v550
    %1680 = vmatpush.bf16.msra.mxu0 %v546
    %1681 = vmatpush.bf16.msra.mxu0 %v542
    %1682 = vmatpush.bf16.msra.mxu0 %v538
    %1683 = vmatpush.bf16.msra.mxu0 %v534
    %1684 = vmatpush.bf16.msra.mxu0 %v530
    %1685 = vmatpush.bf16.msra.mxu0 %v526
    %1686 = vmatpush.bf16.msra.mxu0 %v522
    %1687 = vmatmul.bf16.gmra.mxu0 %v1678
    %v1688 = vpop.f32.mrf.mxu0
    %v1689 = vadd.f32 0.0, %v1688
    %v1690 = vpop.f32.mrf.mxu0
    %1691 = vdwg.mxu0
    %1692 = vmatpush.bf16.msra.mxu0 %v551
    %1693 = vmatpush.bf16.msra.mxu0 %v547
    %1694 = vmatpush.bf16.msra.mxu0 %v543
    %1695 = vmatpush.bf16.msra.mxu0 %v539
    %1696 = vmatpush.bf16.msra.mxu0 %v535
    %1697 = vmatpush.bf16.msra.mxu0 %v531
    %1698 = vmatpush.bf16.msra.mxu0 %v527
    %1699 = vmatpush.bf16.msra.mxu0 %v523
    %1700 = vmatmul.bf16.gmra.mxu0 %v1678
    %v1701 = vpop.f32.mrf.mxu0
    %v1702 = vadd.f32 0.0, %v1701
    %v1703 = vpop.f32.mrf.mxu0
    %1704 = vdwg.mxu0
    %1705 = vmatpush.bf16.msra.mxu0 %v552
    %1706 = vmatpush.bf16.msra.mxu0 %v548
    %1707 = vmatpush.bf16.msra.mxu0 %v544
    %1708 = vmatpush.bf16.msra.mxu0 %v540
    %1709 = vmatpush.bf16.msra.mxu0 %v536
    %1710 = vmatpush.bf16.msra.mxu0 %v532
    %1711 = vmatpush.bf16.msra.mxu0 %v528
    %1712 = vmatpush.bf16.msra.mxu0 %v524
    %1713 = vmatmul.bf16.gmra.mxu0 %v1678
    %v1714 = vpop.f32.mrf.mxu0
    %v1715 = vadd.f32 0.0, %v1714
    %v1716 = vpop.f32.mrf.mxu0
    %1717 = vdwg.mxu0
    %1718 = vmatpush.bf16.msra.mxu0 %v553
    %1719 = vmatpush.bf16.msra.mxu0 %v549
    %1720 = vmatpush.bf16.msra.mxu0 %v545
    %1721 = vmatpush.bf16.msra.mxu0 %v541
    %1722 = vmatpush.bf16.msra.mxu0 %v537
    %1723 = vmatpush.bf16.msra.mxu0 %v533
    %1724 = vmatpush.bf16.msra.mxu0 %v529
    %1725 = vmatpush.bf16.msra.mxu0 %v525
    %1726 = vmatmul.bf16.gmra.mxu0 %v1678
    %v1727 = vpop.f32.mrf.mxu0
    %v1728 = vadd.f32 0.0, %v1727
    %v1729 = vpop.f32.mrf.mxu0
    %1730 = vdwg.mxu0
    %v1731 = vadd.f32 %v1674, %v1689
    %v1732 = vadd.f32 %v1675, %v1702
    %v1733 = vadd.f32 %v1676, %v1715
    %v1734 = vadd.f32 %v1677, %v1728
    %v1735 = vmul.f32 %v1731, 0.5
    %v1736 = vmul.f32 %v1732, 0.5
    %v1737 = vmul.f32 %v1733, 0.5
    %v1738 = vtanh.pop %v1735
    %v1739 = vtanh.pop %v1736
    %v1740 = vtanh.pop %v1737
    %v1741 = vmul.f32 %v1738, 0.5
    %v1742 = vmul.f32 %v1739, 0.5
    %v1743 = vmul.f32 %v1740, 0.5
    %v1744 = vadd.f32 %v1741, 0.5
    %v1745 = vadd.f32 %v1742, 0.5
    %v1746 = vadd.f32 %v1743, 0.5
    %v1747 = vtanh.pop %v1734
    %v1748 = vmul.f32 %v1745, %v1596
    %v1749 = vmul.f32 %v1744, %v1747
    %v1750 = vadd.f32 %v1748, %v1749
    %v1751 = vtanh.pop %v1750
    %v1752 = vmul.f32 %v1746, %v1751
    %v1753 = vadd.f32 %v1752, %v1670
    %v1754 = vpack.c.bf16 %v1753, %v1753
    %1755 = vmatpush.bf16.msra.mxu0 %v795
    %1756 = vmatpush.bf16.msra.mxu0 %v791
    %1757 = vmatpush.bf16.msra.mxu0 %v787
    %1758 = vmatpush.bf16.msra.mxu0 %v783
    %1759 = vmatpush.bf16.msra.mxu0 %v779
    %1760 = vmatpush.bf16.msra.mxu0 %v775
    %1761 = vmatpush.bf16.msra.mxu0 %v771
    %1762 = vmatpush.bf16.msra.mxu0 %v767
    %1763 = vmatmul.bf16.gmra.mxu0 %v1754
    %v1764 = vpop.f32.mrf.mxu0
    %v1765 = vadd.f32 %v663, %v1764
    %v1766 = vpop.f32.mrf.mxu0
    %1767 = vdwg.mxu0
    %1768 = vmatpush.bf16.msra.mxu0 %v796
    %1769 = vmatpush.bf16.msra.mxu0 %v792
    %1770 = vmatpush.bf16.msra.mxu0 %v788
    %1771 = vmatpush.bf16.msra.mxu0 %v784
    %1772 = vmatpush.bf16.msra.mxu0 %v780
    %1773 = vmatpush.bf16.msra.mxu0 %v776
    %1774 = vmatpush.bf16.msra.mxu0 %v772
    %1775 = vmatpush.bf16.msra.mxu0 %v768
    %1776 = vmatmul.bf16.gmra.mxu0 %v1754
    %v1777 = vpop.f32.mrf.mxu0
    %v1778 = vadd.f32 %v664, %v1777
    %v1779 = vpop.f32.mrf.mxu0
    %1780 = vdwg.mxu0
    %1781 = vmatpush.bf16.msra.mxu0 %v797
    %1782 = vmatpush.bf16.msra.mxu0 %v793
    %1783 = vmatpush.bf16.msra.mxu0 %v789
    %1784 = vmatpush.bf16.msra.mxu0 %v785
    %1785 = vmatpush.bf16.msra.mxu0 %v781
    %1786 = vmatpush.bf16.msra.mxu0 %v777
    %1787 = vmatpush.bf16.msra.mxu0 %v773
    %1788 = vmatpush.bf16.msra.mxu0 %v769
    %1789 = vmatmul.bf16.gmra.mxu0 %v1754
    %v1790 = vpop.f32.mrf.mxu0
    %v1791 = vadd.f32 %v665, %v1790
    %v1792 = vpop.f32.mrf.mxu0
    %1793 = vdwg.mxu0
    %1794 = vmatpush.bf16.msra.mxu0 %v798
    %1795 = vmatpush.bf16.msra.mxu0 %v794
    %1796 = vmatpush.bf16.msra.mxu0 %v790
    %1797 = vmatpush.bf16.msra.mxu0 %v786
    %1798 = vmatpush.bf16.msra.mxu0 %v782
    %1799 = vmatpush.bf16.msra.mxu0 %v778
    %1800 = vmatpush.bf16.msra.mxu0 %v774
    %1801 = vmatpush.bf16.msra.mxu0 %v770
    %1802 = vmatmul.bf16.gmra.mxu0 %v1754
    %v1803 = vpop.f32.mrf.mxu0
    %v1804 = vadd.f32 %v666, %v1803
    %v1805 = vpop.f32.mrf.mxu0
    %1806 = vdwg.mxu0
    %v1807 = vmul.f32 %v1765, 0.5
    %v1808 = vmul.f32 %v1778, 0.5
    %v1809 = vmul.f32 %v1791, 0.5
    %v1810 = vtanh.pop %v1807
    %v1811 = vtanh.pop %v1808
    %v1812 = vtanh.pop %v1809
    %v1813 = vmul.f32 %v1810, 0.5
    %v1814 = vmul.f32 %v1811, 0.5
    %v1815 = vmul.f32 %v1812, 0.5
    %v1816 = vadd.f32 %v1813, 0.5
    %v1817 = vadd.f32 %v1814, 0.5
    %v1818 = vadd.f32 %v1815, 0.5
    %v1819 = vtanh.pop %v1804
    %v1820 = vmul.f32 %v1817, %v1668
    %v1821 = vmul.f32 %v1816, %v1819
    %v1822 = vadd.f32 %v1820, %v1821
    %v1823 = vtanh.pop %v1822
    %v1824 = vmul.f32 %v1818, %v1823
    %s1825 = smul.u32 7, 4
    %s1826 = smul.addr %s1825, 8
    %s1827 = scalar_lea.vmem [#allocation2], %s1826
    %v1828 = vld [vmem:[%s1827] sm:$0xff]
    %v1829 = vld [vmem:[%s1827 + $0x8] sm:$0xff]
    %v1830 = vld [vmem:[%s1827 + $0x10] sm:$0xff]
    %v1831 = vld [vmem:[%s1827 + $0x18] sm:$0xff]
    %v1832 = vpack.c.bf16 %v1752, %v1752
    %1833 = vmatpush.bf16.msra.mxu0 %v550
    %1834 = vmatpush.bf16.msra.mxu0 %v546
    %1835 = vmatpush.bf16.msra.mxu0 %v542
    %1836 = vmatpush.bf16.msra.mxu0 %v538
    %1837 = vmatpush.bf16.msra.mxu0 %v534
    %1838 = vmatpush.bf16.msra.mxu0 %v530
    %1839 = vmatpush.bf16.msra.mxu0 %v526
    %1840 = vmatpush.bf16.msra.mxu0 %v522
    %1841 = vmatmul.bf16.gmra.mxu0 %v1832
    %v1842 = vpop.f32.mrf.mxu0
    %v1843 = vadd.f32 0.0, %v1842
    %v1844 = vpop.f32.mrf.mxu0
    %1845 = vdwg.mxu0
    %1846 = vmatpush.bf16.msra.mxu0 %v551
    %1847 = vmatpush.bf16.msra.mxu0 %v547
    %1848 = vmatpush.bf16.msra.mxu0 %v543
    %1849 = vmatpush.bf16.msra.mxu0 %v539
    %1850 = vmatpush.bf16.msra.mxu0 %v535
    %1851 = vmatpush.bf16.msra.mxu0 %v531
    %1852 = vmatpush.bf16.msra.mxu0 %v527
    %1853 = vmatpush.bf16.msra.mxu0 %v523
    %1854 = vmatmul.bf16.gmra.mxu0 %v1832
    %v1855 = vpop.f32.mrf.mxu0
    %v1856 = vadd.f32 0.0, %v1855
    %v1857 = vpop.f32.mrf.mxu0
    %1858 = vdwg.mxu0
    %1859 = vmatpush.bf16.msra.mxu0 %v552
    %1860 = vmatpush.bf16.msra.mxu0 %v548
    %1861 = vmatpush.bf16.msra.mxu0 %v544
    %1862 = vmatpush.bf16.msra.mxu0 %v540
    %1863 = vmatpush.bf16.msra.mxu0 %v536
    %1864 = vmatpush.bf16.msra.mxu0 %v532
    %1865 = vmatpush.bf16.msra.mxu0 %v528
    %1866 = vmatpush.bf16.msra.mxu0 %v524
    %1867 = vmatmul.bf16.gmra.mxu0 %v1832
    %v1868 = vpop.f32.mrf.mxu0
    %v1869 = vadd.f32 0.0, %v1868
    %v1870 = vpop.f32.mrf.mxu0
    %1871 = vdwg.mxu0
    %1872 = vmatpush.bf16.msra.mxu0 %v553
    %1873 = vmatpush.bf16.msra.mxu0 %v549
    %1874 = vmatpush.bf16.msra.mxu0 %v545
    %1875 = vmatpush.bf16.msra.mxu0 %v541
    %1876 = vmatpush.bf16.msra.mxu0 %v537
    %1877 = vmatpush.bf16.msra.mxu0 %v533
    %1878 = vmatpush.bf16.msra.mxu0 %v529
    %1879 = vmatpush.bf16.msra.mxu0 %v525
    %1880 = vmatmul.bf16.gmra.mxu0 %v1832
    %v1881 = vpop.f32.mrf.mxu0
    %v1882 = vadd.f32 0.0, %v1881
    %v1883 = vpop.f32.mrf.mxu0
    %1884 = vdwg.mxu0
    %v1885 = vadd.f32 %v1828, %v1843
    %v1886 = vadd.f32 %v1829, %v1856
    %v1887 = vadd.f32 %v1830, %v1869
    %v1888 = vadd.f32 %v1831, %v1882
    %v1889 = vmul.f32 %v1885, 0.5
    %v1890 = vmul.f32 %v1886, 0.5
    %v1891 = vmul.f32 %v1887, 0.5
    %v1892 = vtanh.pop %v1889
    %v1893 = vtanh.pop %v1890
    %v1894 = vtanh.pop %v1891
    %v1895 = vmul.f32 %v1892, 0.5
    %v1896 = vmul.f32 %v1893, 0.5
    %v1897 = vmul.f32 %v1894, 0.5
    %v1898 = vadd.f32 %v1895, 0.5
    %v1899 = vadd.f32 %v1896, 0.5
    %v1900 = vadd.f32 %v1897, 0.5
    %v1901 = vtanh.pop %v1888
    %v1902 = vmul.f32 %v1899, %v1750
    %v1903 = vmul.f32 %v1898, %v1901
    %v1904 = vadd.f32 %v1902, %v1903
    %v1905 = vtanh.pop %v1904
    %v1906 = vmul.f32 %v1900, %v1905
    %v1907 = vadd.f32 %v1906, %v1824
    %v1908 = vpack.c.bf16 %v1907, %v1907
    %1909 = vmatpush.bf16.msra.mxu0 %v795
    %1910 = vmatpush.bf16.msra.mxu0 %v791
    %1911 = vmatpush.bf16.msra.mxu0 %v787
    %1912 = vmatpush.bf16.msra.mxu0 %v783
    %1913 = vmatpush.bf16.msra.mxu0 %v779
    %1914 = vmatpush.bf16.msra.mxu0 %v775
    %1915 = vmatpush.bf16.msra.mxu0 %v771
    %1916 = vmatpush.bf16.msra.mxu0 %v767
    %1917 = vmatmul.bf16.gmra.mxu0 %v1908
    %v1918 = vpop.f32.mrf.mxu0
    %v1919 = vadd.f32 %v663, %v1918
    %v1920 = vpop.f32.mrf.mxu0
    %1921 = vdwg.mxu0
    %1922 = vmatpush.bf16.msra.mxu0 %v796
    %1923 = vmatpush.bf16.msra.mxu0 %v792
    %1924 = vmatpush.bf16.msra.mxu0 %v788
    %1925 = vmatpush.bf16.msra.mxu0 %v784
    %1926 = vmatpush.bf16.msra.mxu0 %v780
    %1927 = vmatpush.bf16.msra.mxu0 %v776
    %1928 = vmatpush.bf16.msra.mxu0 %v772
    %1929 = vmatpush.bf16.msra.mxu0 %v768
    %1930 = vmatmul.bf16.gmra.mxu0 %v1908
    %v1931 = vpop.f32.mrf.mxu0
    %v1932 = vadd.f32 %v664, %v1931
    %v1933 = vpop.f32.mrf.mxu0
    %1934 = vdwg.mxu0
    %1935 = vmatpush.bf16.msra.mxu0 %v797
    %1936 = vmatpush.bf16.msra.mxu0 %v793
    %1937 = vmatpush.bf16.msra.mxu0 %v789
    %1938 = vmatpush.bf16.msra.mxu0 %v785
    %1939 = vmatpush.bf16.msra.mxu0 %v781
    %1940 = vmatpush.bf16.msra.mxu0 %v777
    %1941 = vmatpush.bf16.msra.mxu0 %v773
    %1942 = vmatpush.bf16.msra.mxu0 %v769
    %1943 = vmatmul.bf16.gmra.mxu0 %v1908
    %v1944 = vpop.f32.mrf.mxu0
    %v1945 = vadd.f32 %v665, %v1944
    %v1946 = vpop.f32.mrf.mxu0
    %1947 = vdwg.mxu0
    %1948 = vmatpush.bf16.msra.mxu0 %v798
    %1949 = vmatpush.bf16.msra.mxu0 %v794
    %1950 = vmatpush.bf16.msra.mxu0 %v790
    %1951 = vmatpush.bf16.msra.mxu0 %v786
    %1952 = vmatpush.bf16.msra.mxu0 %v782
    %1953 = vmatpush.bf16.msra.mxu0 %v778
    %1954 = vmatpush.bf16.msra.mxu0 %v774
    %1955 = vmatpush.bf16.msra.mxu0 %v770
    %1956 = vmatmul.bf16.gmra.mxu0 %v1908
    %v1957 = vpop.f32.mrf.mxu0
    %v1958 = vadd.f32 %v666, %v1957
    %v1959 = vpop.f32.mrf.mxu0
    %1960 = vdwg.mxu0
    %v1961 = vmul.f32 %v1919, 0.5
    %v1962 = vmul.f32 %v1932, 0.5
    %v1963 = vmul.f32 %v1945, 0.5
    %v1964 = vtanh.pop %v1961
    %v1965 = vtanh.pop %v1962
    %v1966 = vtanh.pop %v1963
    %v1967 = vmul.f32 %v1964, 0.5
    %v1968 = vmul.f32 %v1965, 0.5
    %v1969 = vmul.f32 %v1966, 0.5
    %v1970 = vadd.f32 %v1967, 0.5
    %v1971 = vadd.f32 %v1968, 0.5
    %v1972 = vadd.f32 %v1969, 0.5
    %v1973 = vtanh.pop %v1958
    %v1974 = vmul.f32 %v1971, %v1822
    %v1975 = vmul.f32 %v1970, %v1973
    %v1976 = vadd.f32 %v1974, %v1975
    %v1977 = vtanh.pop %v1976
    %v1978 = vmul.f32 %v1972, %v1977
    %1979 = vst [vmem:[#allocation3] sm:$0xff] %v1906
    %1980 = vst [vmem:[#allocation4] sm:$0xff] %v1904
    %1981 = vst [vmem:[#allocation5] sm:$0xff] %v1978
    %1982 = vst [vmem:[#allocation6] sm:$0xff] %v1976
    // Predicated region
    $region54: #{tpu_custom_call.1} parent=1 // pred_check
      %p1983 = pneg %p94
    $region55: #{tpu_custom_call.1} parent=1 // pred_check_branch
      %1985 = sbr.rel (%p1983) target = $region57
    $region56: #{tpu_custom_call.1} parent=1 // pred_region
      %v1986 = vpack.c.bf16 %v1978, %v1978
      %v1987 = vld [vmem:[#allocation13] sm:$0xf]
      %v1988 = vld [vmem:[#allocation13 + $0x4] sm:$0xf]
      %v1989 = vld [vmem:[#allocation13 + $0x8] sm:$0xf]
      %v1990 = vld [vmem:[#allocation13 + $0xc] sm:$0xf]
      %v1991 = vld [vmem:[#allocation13 + $0x10] sm:$0xf]
      %v1992 = vld [vmem:[#allocation13 + $0x14] sm:$0xf]
      %v1993 = vld [vmem:[#allocation13 + $0x18] sm:$0xf]
      %v1994 = vld [vmem:[#allocation13 + $0x1c] sm:$0xf]
      %v1995 = vld [vmem:[#allocation13 + $0x20] sm:$0xf]
      %v1996 = vld [vmem:[#allocation13 + $0x24] sm:$0xf]
      %v1997 = vld [vmem:[#allocation13 + $0x28] sm:$0xf]
      %v1998 = vld [vmem:[#allocation13 + $0x2c] sm:$0xf]
      %v1999 = vld [vmem:[#allocation13 + $0x30] sm:$0xf]
      %v2000 = vld [vmem:[#allocation13 + $0x34] sm:$0xf]
      %v2001 = vld [vmem:[#allocation13 + $0x38] sm:$0xf]
      %v2002 = vld [vmem:[#allocation13 + $0x3c] sm:$0xf]
      %v2003 = vld [vmem:[%s7] sm:$0x1]
      %v2005 = vperm.slane %v2003, 0
      %v2023 = vunpack.c.l.b16 %v1987
      %v2024 = vunpack.c.l.b16 %v1988
      %v2025 = vunpack.c.l.b16 %v1989
      %v2026 = vunpack.c.l.b16 %v1990
      %v2027 = vunpack.c.l.b16 %v1991
      %v2028 = vunpack.c.l.b16 %v1992
      %v2029 = vunpack.c.l.b16 %v1993
      %v2030 = vunpack.c.l.b16 %v1994
      %v2031 = vunpack.c.l.b16 %v1995
      %v2032 = vunpack.c.l.b16 %v1996
      %v2033 = vunpack.c.l.b16 %v1997
      %v2034 = vunpack.c.l.b16 %v1998
      %v2035 = vunpack.c.l.b16 %v1999
      %v2036 = vunpack.c.l.b16 %v2000
      %v2037 = vunpack.c.l.b16 %v2001
      %v2038 = vunpack.c.l.b16 %v2002
      %v2039 = vpack.c.b16 %v2024, %v2023
      %v2040 = vpack.c.b16 %v2026, %v2025
      %v2041 = vpack.c.b16 %v2028, %v2027
      %v2042 = vpack.c.b16 %v2030, %v2029
      %v2043 = vpack.c.b16 %v2032, %v2031
      %v2044 = vpack.c.b16 %v2034, %v2033
      %v2045 = vpack.c.b16 %v2036, %v2035
      %v2046 = vpack.c.b16 %v2038, %v2037
      %2055 = vmatpush.bf16.msra.mxu0 %v2046
      %2056 = vmatpush.bf16.msra.mxu0 %v2045
      %2057 = vmatpush.bf16.msra.mxu0 %v2044
      %2058 = vmatpush.bf16.msra.mxu0 %v2043
      %2059 = vmatpush.bf16.msra.mxu0 %v2042
      %2060 = vmatpush.bf16.msra.mxu0 %v2041
      %2061 = vmatpush.bf16.msra.mxu0 %v2040
      %2062 = vmatpush.bf16.msra.mxu0 %v2039
      %2063 = vmatmul.bf16.gmra.mxu0 %v1986
      %v2064 = vpop.f32.mrf.mxu0
      %v2065 = vadd.f32 %v2005, %v2064
      %v2066 = vpop.f32.mrf.mxu0
      %2067 = vdwg.mxu0
      %2068 = vst [vmem:[#allocation15] sm:$0xff] %v2065
    $region57: #{tpu_custom_call.1} parent=1 // pred_fallthru
      _
    // Predicated region
    $region58: #{tpu_custom_call.1} parent=1 // pred_check
      _
    $region59: #{tpu_custom_call.1} parent=1 // pred_check_branch
      %2070 = sbr.rel (0) target = $region61
    $region60: #{tpu_custom_call.1} parent=1 // pred_region
      %2072 = vsyncadd [#allocation9], 0
      %s2074 = sshll.u32 [#allocation15], 4
      %s2075 = int_to_ptr.vmem [resolvable:$true] %s2074
      %s2076 = sshll.u32 %s8, 4
      %s2077 = int_to_ptr.hbm [resolvable:$true] %s2076
      %2079 = dma.vmem_to_hbm [thread:$0]  %s2075, 128, %s2077, [#allocation9]
    $region61: #{tpu_custom_call.1} parent=1 // pred_fallthru
      _
    // Predicated region
    $region62: #{tpu_custom_call.1} parent=1 // pred_check
      _
    $region63: #{tpu_custom_call.1} parent=1 // pred_check_branch
      %2081 = sbr.rel (0) target = $region65
    $region64: #{tpu_custom_call.1} parent=1 // pred_region
      %2083 = dma.done [#allocation9], 128
    $region65: #{tpu_custom_call.1} parent=1 // pred_fallthru
      _
    %2084 = vsyncpa [#allocation8], 1
    %2085 = vsyncpa [#allocation11], 1
    %2086 = vsyncpa [#allocation14], 1
    %2087 = vsyncpa [#allocation9], 1

</llo_original>
